<compile_context>
chip_gen: v7x
topology: tpu7x:2x2x1
jax: 0.10.0
libtpu: 0.0.40
codegen_flags: <defaults>
</compile_context>

<pallas_src>
import functools

import jax
import jax.numpy as jnp
from jax import lax
from jax.experimental import pallas as pl
from jax.experimental.pallas import tpu as pltpu


def encoder_block_kernel(
    valid_lens_ref,                 # SMEM scalar prefetch, (B,) int32
    x_ref,                          # (T, H) f32  -- rows of batch b
    wqkv_ref,                       # (H, 3H) bf16 fused Q/K/V projection
    wo_ref,                         # (H, H)  bf16 output projection
    w1_ref,                         # (H, F)  bf16 FFN dense1
    w2_ref,                         # (F, H)  bf16 FFN dense2
    pvec_ref,                       # (6, P)  f32 packed small params
    o_ref,                          # (T, H) f32
    *, num_heads,
):
    T, H = x_ref.shape
    F = w1_ref.shape[1]
    nh = num_heads
    hd = H // nh
    scale = 1.0 / float(hd) ** 0.5
    b = pl.program_id(0)

    x = x_ref[...]                               # (T, H) f32, lane-dense
    xb = x.astype(jnp.bfloat16)

    # --- fused QKV projection: one MXU pass, full-H contraction -------------
    qkv = jnp.dot(xb, wqkv_ref[...], preferred_element_type=jnp.float32)  # (T, 3H)
    q = (qkv[:, :H] * scale).reshape(T, nh, hd)        # 1/sqrt(hd) folded once
    k = qkv[:, H:2 * H].reshape(T, nh, hd)
    v = qkv[:, 2 * H:].reshape(T, nh, hd)
    qh = jnp.transpose(q, (1, 0, 2)).astype(jnp.bfloat16)   # (nh, T, hd)
    kh = jnp.transpose(k, (1, 0, 2)).astype(jnp.bfloat16)
    vh = jnp.transpose(v, (1, 0, 2)).astype(jnp.bfloat16)

    # --- additive key-validity bias from one SMEM scalar ---------------------
    vlen = valid_lens_ref[b]                                  # scalar int32
    col = lax.broadcasted_iota(jnp.int32, (1, 1, T), 2)       # key index
    bias = jnp.where(col < vlen, 0.0, -1e9).astype(jnp.float32)

    # --- batched multi-head attention (all heads in one einsum) -------------
    s = jnp.einsum('hqd,hkd->hqk', qh, kh,
                   preferred_element_type=jnp.float32) + bias  # (nh, T, T)
    s = s - jnp.max(s, axis=-1, keepdims=True)
    p = jnp.exp(s)
    p = p * pl.reciprocal(jnp.sum(p, axis=-1, keepdims=True), approx=True)
    ctx = jnp.einsum('hqk,hkd->hqd', p.astype(jnp.bfloat16), vh,
                     preferred_element_type=jnp.float32)       # (nh, T, hd)

    # --- single full output projection (K = H contraction) ------------------
    ctx2 = jnp.transpose(ctx, (1, 0, 2)).reshape(T, H)         # (T, H)
    attn_out = jnp.dot(ctx2.astype(jnp.bfloat16), wo_ref[...],
                       preferred_element_type=jnp.float32)     # (T, H)

    # --- unpack small params (single VMEM tile) ------------------------------
    pk = pvec_ref[...]
    b1 = pk[0:1, :F]
    b2 = pk[1:2, :H]
    g1 = pk[2:3, :H]
    be1 = pk[3:4, :H]
    g2 = pk[4:5, :H]
    be2 = pk[5:6, :H]

    def layer_norm(z, gamma, beta):
        mu = jnp.mean(z, axis=-1, keepdims=True)
        c = z - mu
        var = jnp.mean(c * c, axis=-1, keepdims=True)
        return c * lax.rsqrt(var + 1e-5) * gamma + beta

    # AddNorm 1 (dropout == identity)
    Y = layer_norm(x + attn_out, g1, be1)

    # PositionWiseFFN: dense1 -> relu -> dense2 (bf16 matmuls, f32 accumulate)
    h1 = jnp.dot(Y.astype(jnp.bfloat16), w1_ref[...],
                 preferred_element_type=jnp.float32) + b1
    h1 = jnp.maximum(h1, 0.0)
    ffn = jnp.dot(h1.astype(jnp.bfloat16), w2_ref[...],
                  preferred_element_type=jnp.float32) + b2

    # AddNorm 2 -> lane-dense (T, H) store
    o_ref[...] = layer_norm(Y + ffn, g2, be2)


def transformer_encoder_block(x, valid_lens, params, *, num_heads):
    B, T, H = x.shape
    F = params["w1"].shape[1]
    P = max(H, F)

    # fuse the three attention input projections into one (H, 3H) bf16 weight
    wqkv = jnp.concatenate([params["wq"], params["wk"], params["wv"]], axis=1)

    # pack the six small vectors into a single (6, P) f32 buffer
    def pad_row(v):
        return jnp.pad(v, ((0, 0), (0, P - v.shape[1])))

    pvec = jnp.concatenate(
        [pad_row(params["b1"]), pad_row(params["b2"]),
         pad_row(params["g1"]), pad_row(params["be1"]),
         pad_row(params["g2"]), pad_row(params["be2"])],
        axis=0).astype(jnp.float32)                            # (6, P)

    x2 = x.reshape(B * T, H)                                   # free wrapper reshape

    grid_spec = pltpu.PrefetchScalarGridSpec(
        num_scalar_prefetch=1,
        grid=(B,),                                             # one step per batch elem
        in_specs=[
            pl.BlockSpec((T, H), lambda b, vl: (b, 0)),        # x rows of batch b
            pl.BlockSpec((H, 3 * H), lambda b, vl: (0, 0)),    # fused Wqkv (constant)
            pl.BlockSpec((H, H), lambda b, vl: (0, 0)),        # Wo
            pl.BlockSpec((H, F), lambda b, vl: (0, 0)),        # W1
            pl.BlockSpec((F, H), lambda b, vl: (0, 0)),        # W2
            pl.BlockSpec((6, P), lambda b, vl: (0, 0)),        # packed small params
        ],
        out_specs=pl.BlockSpec((T, H), lambda b, vl: (b, 0)),
    )

    kernel = functools.partial(encoder_block_kernel, num_heads=num_heads)
    out2 = pl.pallas_call(
        kernel,
        out_shape=jax.ShapeDtypeStruct((B * T, H), jnp.float32),
        grid_spec=grid_spec,
        compiler_params=pltpu.CompilerParams(
            dimension_semantics=("parallel",),                 # megacore / v7x 2-TC
            # 48 MiB: above v5e/v6e defaults for bigger tiles at realistic
            # shapes, still under v7x's 64 MiB physical VMEM.
            vmem_limit_bytes=48 * 1024 * 1024),
    )(valid_lens, x2, wqkv, params["wo"], params["w1"], params["w2"], pvec)

    return out2.reshape(B, T, H)


def init_params(key, num_hiddens, ffn_num_hiddens):
    H, F = num_hiddens, ffn_num_hiddens
    ks = jax.random.split(key, 8)
    std = 0.02
    bf = jnp.bfloat16
    return {
        # attention projections (use_bias=False), bf16 storage for MXU
        "wq": (std * jax.random.normal(ks[0], (H, H), jnp.float32)).astype(bf),
        "wk": (std * jax.random.normal(ks[1], (H, H), jnp.float32)).astype(bf),
        "wv": (std * jax.random.normal(ks[2], (H, H), jnp.float32)).astype(bf),
        "wo": (std * jax.random.normal(ks[3], (H, H), jnp.float32)).astype(bf),
        # position-wise FFN (with bias, like nn.LazyLinear defaults)
        "w1": (std * jax.random.normal(ks[4], (H, F), jnp.float32)).astype(bf),
        "b1": std * jax.random.normal(ks[5], (1, F), jnp.float32),
        "w2": (std * jax.random.normal(ks[6], (F, H), jnp.float32)).astype(bf),
        "b2": std * jax.random.normal(ks[7], (1, H), jnp.float32),
        # LayerNorm: weight=1, bias=0 (PyTorch defaults), f32
        "g1": jnp.ones((1, H), jnp.float32),
        "be1": jnp.zeros((1, H), jnp.float32),
        "g2": jnp.ones((1, H), jnp.float32),
        "be2": jnp.zeros((1, H), jnp.float32),
    }


if __name__ == "__main__":
    B, T, H = 2, 8, 32          # batch, sequence, hidden
    num_heads = 4
    ffn_num_hiddens = 64

    key = jax.random.PRNGKey(0)
    kx, kp = jax.random.split(key)
    x = jax.random.normal(kx, (B, T, H), jnp.float32)
    valid_lens = jnp.array([3, 2], dtype=jnp.int32)   # as in the reference snippet

    params = init_params(kp, H, ffn_num_hiddens)

    out = transformer_encoder_block(x, valid_lens, params, num_heads=num_heads)
    out = jax.block_until_ready(out)

    assert out.shape == (B, T, H) and bool(jnp.all(jnp.isfinite(out)))
    print("KERNEL_OK")
</pallas_src>

<mosaic_0001>
module attributes {stable_mosaic.version = 11 : i64} {
  func.func @encoder_block_kernel(%arg0: i32, %arg1: memref<2xi32, #tpu.memory_space<smem>>, %arg2: memref<8x32xf32, #tpu.memory_space<vmem>>, %arg3: memref<32x96xbf16, #tpu.memory_space<vmem>>, %arg4: memref<32x32xbf16, #tpu.memory_space<vmem>>, %arg5: memref<32x64xbf16, #tpu.memory_space<vmem>>, %arg6: memref<64x32xbf16, #tpu.memory_space<vmem>>, %arg7: memref<6x64xf32, #tpu.memory_space<vmem>>, %arg8: memref<8x32xf32, #tpu.memory_space<vmem>>) attributes {dimension_semantics = [#tpu.dimension_semantics<parallel>], iteration_bounds = array<i64: 2>, scalar_prefetch = 1 : i64, scratch_operands = 0 : i64, tpu.core_type = #tpu.core_type<tc>, window_params = [{transform_indices = @transform_0, window_bounds = array<i64: 8, 32>}, {pipeline_mode = #tpu.pipeline_mode<synchronous>, transform_indices = @transform_1, window_bounds = array<i64: 32, 96>}, {pipeline_mode = #tpu.pipeline_mode<synchronous>, transform_indices = @transform_2, window_bounds = array<i64: 32, 32>}, {pipeline_mode = #tpu.pipeline_mode<synchronous>, transform_indices = @transform_3, window_bounds = array<i64: 32, 64>}, {pipeline_mode = #tpu.pipeline_mode<synchronous>, transform_indices = @transform_4, window_bounds = array<i64: 64, 32>}, {pipeline_mode = #tpu.pipeline_mode<synchronous>, transform_indices = @transform_5, window_bounds = array<i64: 6, 64>}, {transform_indices = @transform_6, window_bounds = array<i64: 8, 32>}]} {
    %c0 = arith.constant 0 : index
    %c0_0 = arith.constant 0 : index
    %0 = vector.load %arg2[%c0, %c0_0] : memref<8x32xf32, #tpu.memory_space<vmem>>, vector<8x32xf32>
    %1 = arith.truncf %0 : vector<8x32xf32> to vector<8x32xbf16>
    %c0_1 = arith.constant 0 : index
    %c0_2 = arith.constant 0 : index
    %2 = vector.load %arg3[%c0_1, %c0_2] : memref<32x96xbf16, #tpu.memory_space<vmem>>, vector<32x96xbf16>
    %cst = arith.constant dense<0.000000e+00> : vector<8x96xf32>
    %3 = tpu.matmul %1, %2, %cst {dimension_numbers = #tpu.dot_dimension_numbers<[1], [0], [0], [1], [0, 0, 1, 1], [], []>} : vector<8x32xbf16>, vector<32x96xbf16>, vector<8x96xf32> -> vector<8x96xf32>
    %4 = vector.extract_strided_slice %3 {offsets = [0, 0], sizes = [8, 32], strides = [1, 1]} : vector<8x96xf32> to vector<8x32xf32>
    %cst_3 = arith.constant 0.353553385 : f32
    %5 = vector.broadcast %cst_3 : f32 to vector<8x32xf32>
    %6 = arith.mulf %4, %5 : vector<8x32xf32>
    %7 = vector.shape_cast %6 : vector<8x32xf32> to vector<8x4x8xf32>
    %8 = vector.extract_strided_slice %3 {offsets = [0, 32], sizes = [8, 32], strides = [1, 1]} : vector<8x96xf32> to vector<8x32xf32>
    %9 = vector.shape_cast %8 : vector<8x32xf32> to vector<8x4x8xf32>
    %10 = vector.extract_strided_slice %3 {offsets = [0, 64], sizes = [8, 32], strides = [1, 1]} : vector<8x96xf32> to vector<8x32xf32>
    %11 = vector.shape_cast %10 : vector<8x32xf32> to vector<8x4x8xf32>
    %12 = tpu.transpose %7, [1, 0, 2] : vector<8x4x8xf32> -> vector<4x8x8xf32>
    %13 = arith.truncf %12 : vector<4x8x8xf32> to vector<4x8x8xbf16>
    %14 = tpu.transpose %9, [1, 0, 2] : vector<8x4x8xf32> -> vector<4x8x8xf32>
    %15 = arith.truncf %14 : vector<4x8x8xf32> to vector<4x8x8xbf16>
    %16 = tpu.transpose %11, [1, 0, 2] : vector<8x4x8xf32> -> vector<4x8x8xf32>
    %17 = arith.truncf %16 : vector<4x8x8xf32> to vector<4x8x8xbf16>
    %18 = arith.index_cast %arg0 : i32 to index
    %19 = memref.load %arg1[%18] : memref<2xi32, #tpu.memory_space<smem>>
    %20 = tpu.iota {dimensions = array<i32: 2>} : vector<1x1x8xi32>
    %21 = vector.broadcast %19 : i32 to vector<1x1x8xi32>
    %22 = arith.cmpi slt, %20, %21 : vector<1x1x8xi32>
    %cst_4 = arith.constant 0.000000e+00 : f32
    %cst_5 = arith.constant -1.000000e+09 : f32
    %23 = vector.broadcast %cst_4 : f32 to vector<1x1x8xf32>
    %24 = vector.broadcast %cst_5 : f32 to vector<1x1x8xf32>
    %25 = arith.select %22, %23, %24 : vector<1x1x8xi1>, vector<1x1x8xf32>
    "tpu.trace_start"() <{level = 10 : i32, message = "hqd,hkd->hqk"}> : () -> ()
    %cst_6 = arith.constant dense<0.000000e+00> : vector<4x8x8xf32>
    %26 = tpu.matmul %13, %15, %cst_6 {dimension_numbers = #tpu.dot_dimension_numbers<[2], [2], [1], [1], [0, 0, 0, 1, 1, 1], [0], [0]>} : vector<4x8x8xbf16>, vector<4x8x8xbf16>, vector<4x8x8xf32> -> vector<4x8x8xf32>
    "tpu.trace_stop"() : () -> ()
    %27 = vector.broadcast %25 : vector<1x1x8xf32> to vector<4x8x8xf32>
    %28 = arith.addf %26, %27 : vector<4x8x8xf32>
    %cst_7 = arith.constant dense<0xFF800000> : vector<4x8xf32>
    %29 = vector.multi_reduction <maximumf>, %28, %cst_7 [2] : vector<4x8x8xf32> to vector<4x8xf32>
    %30 = vector.shape_cast %29 : vector<4x8xf32> to vector<4x8x1xf32>
    %31 = vector.broadcast %30 : vector<4x8x1xf32> to vector<4x8x8xf32>
    %32 = arith.subf %28, %31 : vector<4x8x8xf32>
    %33 = math.exp %32 : vector<4x8x8xf32>
    %cst_8 = arith.constant dense<0.000000e+00> : vector<4x8xf32>
    %34 = vector.multi_reduction <add>, %33, %cst_8 [2] : vector<4x8x8xf32> to vector<4x8xf32>
    %35 = vector.shape_cast %34 : vector<4x8xf32> to vector<4x8x1xf32>
    %36 = tpu.reciprocal %35 {approx = true} : vector<4x8x1xf32> -> vector<4x8x1xf32>
    %37 = vector.broadcast %36 : vector<4x8x1xf32> to vector<4x8x8xf32>
    %38 = arith.mulf %33, %37 : vector<4x8x8xf32>
    %39 = arith.truncf %38 : vector<4x8x8xf32> to vector<4x8x8xbf16>
    "tpu.trace_start"() <{level = 10 : i32, message = "hqk,hkd->hqd"}> : () -> ()
    %cst_9 = arith.constant dense<0.000000e+00> : vector<4x8x8xf32>
    %40 = tpu.matmul %39, %17, %cst_9 {dimension_numbers = #tpu.dot_dimension_numbers<[2], [1], [1], [2], [0, 0, 0, 1, 1, 2], [0], [0]>} : vector<4x8x8xbf16>, vector<4x8x8xbf16>, vector<4x8x8xf32> -> vector<4x8x8xf32>
    "tpu.trace_stop"() : () -> ()
    %41 = tpu.transpose %40, [1, 0, 2] : vector<4x8x8xf32> -> vector<8x4x8xf32>
    %42 = vector.shape_cast %41 : vector<8x4x8xf32> to vector<8x32xf32>
    %43 = arith.truncf %42 : vector<8x32xf32> to vector<8x32xbf16>
    %c0_10 = arith.constant 0 : index
    %c0_11 = arith.constant 0 : index
    %44 = vector.load %arg4[%c0_10, %c0_11] : memref<32x32xbf16, #tpu.memory_space<vmem>>, vector<32x32xbf16>
    %cst_12 = arith.constant dense<0.000000e+00> : vector<8x32xf32>
    %45 = tpu.matmul %43, %44, %cst_12 {dimension_numbers = #tpu.dot_dimension_numbers<[1], [0], [0], [1], [0, 0, 1, 1], [], []>} : vector<8x32xbf16>, vector<32x32xbf16>, vector<8x32xf32> -> vector<8x32xf32>
    %c0_13 = arith.constant 0 : index
    %c0_14 = arith.constant 0 : index
    %46 = vector.load %arg7[%c0_13, %c0_14] : memref<6x64xf32, #tpu.memory_space<vmem>>, vector<6x64xf32>
    %47 = vector.extract_strided_slice %46 {offsets = [0, 0], sizes = [1, 64], strides = [1, 1]} : vector<6x64xf32> to vector<1x64xf32>
    %48 = vector.extract_strided_slice %46 {offsets = [1, 0], sizes = [1, 32], strides = [1, 1]} : vector<6x64xf32> to vector<1x32xf32>
    %49 = vector.extract_strided_slice %46 {offsets = [2, 0], sizes = [1, 32], strides = [1, 1]} : vector<6x64xf32> to vector<1x32xf32>
    %50 = vector.extract_strided_slice %46 {offsets = [3, 0], sizes = [1, 32], strides = [1, 1]} : vector<6x64xf32> to vector<1x32xf32>
    %51 = vector.extract_strided_slice %46 {offsets = [4, 0], sizes = [1, 32], strides = [1, 1]} : vector<6x64xf32> to vector<1x32xf32>
    %52 = vector.extract_strided_slice %46 {offsets = [5, 0], sizes = [1, 32], strides = [1, 1]} : vector<6x64xf32> to vector<1x32xf32>
    %53 = arith.addf %0, %45 : vector<8x32xf32>
    %cst_15 = arith.constant dense<0.000000e+00> : vector<8xf32>
    %54 = vector.multi_reduction <add>, %53, %cst_15 [1] : vector<8x32xf32> to vector<8xf32>
    %55 = vector.shape_cast %54 : vector<8xf32> to vector<8x1xf32>
    %cst_16 = arith.constant 3.200000e+01 : f32
    %56 = vector.broadcast %cst_16 : f32 to vector<8x1xf32>
    %57 = arith.divf %55, %56 : vector<8x1xf32>
    %58 = vector.broadcast %57 : vector<8x1xf32> to vector<8x32xf32>
    %59 = arith.subf %53, %58 : vector<8x32xf32>
    %60 = arith.mulf %59, %59 : vector<8x32xf32>
    %cst_17 = arith.constant dense<0.000000e+00> : vector<8xf32>
    %61 = vector.multi_reduction <add>, %60, %cst_17 [1] : vector<8x32xf32> to vector<8xf32>
    %62 = vector.shape_cast %61 : vector<8xf32> to vector<8x1xf32>
    %cst_18 = arith.constant 3.200000e+01 : f32
    %63 = vector.broadcast %cst_18 : f32 to vector<8x1xf32>
    %64 = arith.divf %62, %63 : vector<8x1xf32>
    %cst_19 = arith.constant 9.99999974E-6 : f32
    %65 = vector.broadcast %cst_19 : f32 to vector<8x1xf32>
    %66 = arith.addf %64, %65 : vector<8x1xf32>
    %67 = math.rsqrt %66 : vector<8x1xf32>
    %68 = vector.broadcast %67 : vector<8x1xf32> to vector<8x32xf32>
    %69 = arith.mulf %59, %68 : vector<8x32xf32>
    %70 = vector.broadcast %49 : vector<1x32xf32> to vector<8x32xf32>
    %71 = arith.mulf %69, %70 : vector<8x32xf32>
    %72 = vector.broadcast %50 : vector<1x32xf32> to vector<8x32xf32>
    %73 = arith.addf %71, %72 : vector<8x32xf32>
    %74 = arith.truncf %73 : vector<8x32xf32> to vector<8x32xbf16>
    %c0_20 = arith.constant 0 : index
    %c0_21 = arith.constant 0 : index
    %75 = vector.load %arg5[%c0_20, %c0_21] : memref<32x64xbf16, #tpu.memory_space<vmem>>, vector<32x64xbf16>
    %cst_22 = arith.constant dense<0.000000e+00> : vector<8x64xf32>
    %76 = tpu.matmul %74, %75, %cst_22 {dimension_numbers = #tpu.dot_dimension_numbers<[1], [0], [0], [1], [0, 0, 1, 1], [], []>} : vector<8x32xbf16>, vector<32x64xbf16>, vector<8x64xf32> -> vector<8x64xf32>
    %77 = vector.broadcast %47 : vector<1x64xf32> to vector<8x64xf32>
    %78 = arith.addf %76, %77 : vector<8x64xf32>
    %cst_23 = arith.constant 0.000000e+00 : f32
    %79 = vector.broadcast %cst_23 : f32 to vector<8x64xf32>
    %80 = arith.maximumf %78, %79 : vector<8x64xf32>
    %81 = arith.truncf %80 : vector<8x64xf32> to vector<8x64xbf16>
    %c0_24 = arith.constant 0 : index
    %c0_25 = arith.constant 0 : index
    %82 = vector.load %arg6[%c0_24, %c0_25] : memref<64x32xbf16, #tpu.memory_space<vmem>>, vector<64x32xbf16>
    %cst_26 = arith.constant dense<0.000000e+00> : vector<8x32xf32>
    %83 = tpu.matmul %81, %82, %cst_26 {dimension_numbers = #tpu.dot_dimension_numbers<[1], [0], [0], [1], [0, 0, 1, 1], [], []>} : vector<8x64xbf16>, vector<64x32xbf16>, vector<8x32xf32> -> vector<8x32xf32>
    %84 = vector.broadcast %48 : vector<1x32xf32> to vector<8x32xf32>
    %85 = arith.addf %83, %84 : vector<8x32xf32>
    %86 = arith.addf %73, %85 : vector<8x32xf32>
    %cst_27 = arith.constant dense<0.000000e+00> : vector<8xf32>
    %87 = vector.multi_reduction <add>, %86, %cst_27 [1] : vector<8x32xf32> to vector<8xf32>
    %88 = vector.shape_cast %87 : vector<8xf32> to vector<8x1xf32>
    %cst_28 = arith.constant 3.200000e+01 : f32
    %89 = vector.broadcast %cst_28 : f32 to vector<8x1xf32>
    %90 = arith.divf %88, %89 : vector<8x1xf32>
    %91 = vector.broadcast %90 : vector<8x1xf32> to vector<8x32xf32>
    %92 = arith.subf %86, %91 : vector<8x32xf32>
    %93 = arith.mulf %92, %92 : vector<8x32xf32>
    %cst_29 = arith.constant dense<0.000000e+00> : vector<8xf32>
    %94 = vector.multi_reduction <add>, %93, %cst_29 [1] : vector<8x32xf32> to vector<8xf32>
    %95 = vector.shape_cast %94 : vector<8xf32> to vector<8x1xf32>
    %cst_30 = arith.constant 3.200000e+01 : f32
    %96 = vector.broadcast %cst_30 : f32 to vector<8x1xf32>
    %97 = arith.divf %95, %96 : vector<8x1xf32>
    %cst_31 = arith.constant 9.99999974E-6 : f32
    %98 = vector.broadcast %cst_31 : f32 to vector<8x1xf32>
    %99 = arith.addf %97, %98 : vector<8x1xf32>
    %100 = math.rsqrt %99 : vector<8x1xf32>
    %101 = vector.broadcast %100 : vector<8x1xf32> to vector<8x32xf32>
    %102 = arith.mulf %92, %101 : vector<8x32xf32>
    %103 = vector.broadcast %51 : vector<1x32xf32> to vector<8x32xf32>
    %104 = arith.mulf %102, %103 : vector<8x32xf32>
    %105 = vector.broadcast %52 : vector<1x32xf32> to vector<8x32xf32>
    %106 = arith.addf %104, %105 : vector<8x32xf32>
    %c0_32 = arith.constant 0 : index
    %c0_33 = arith.constant 0 : index
    %107 = vector.load %arg8[%c0_32, %c0_33] : memref<8x32xf32, #tpu.memory_space<vmem>>, vector<8x32xf32>
    tpu.vector_store %arg8[%c0_32, %c0_33], %106 {strides = array<i32>} : memref<8x32xf32, #tpu.memory_space<vmem>>, vector<8x32xf32>,
    return
  }
  func.func @transform_0(%arg0: i32, %arg1: memref<2xi32, #tpu.memory_space<smem>>) -> (i32, i32) {
    %c0_i32 = arith.constant 0 : i32
    %c0_i32_0 = arith.constant 0 : i32
    return %arg0, %c0_i32 : i32, i32
  }
  func.func @transform_1(%arg0: i32, %arg1: memref<2xi32, #tpu.memory_space<smem>>) -> (i32, i32) {
    %c0_i32 = arith.constant 0 : i32
    %c0_i32_0 = arith.constant 0 : i32
    %c0_i32_1 = arith.constant 0 : i32
    return %c0_i32, %c0_i32_0 : i32, i32
  }
  func.func @transform_2(%arg0: i32, %arg1: memref<2xi32, #tpu.memory_space<smem>>) -> (i32, i32) {
    %c0_i32 = arith.constant 0 : i32
    %c0_i32_0 = arith.constant 0 : i32
    %c0_i32_1 = arith.constant 0 : i32
    return %c0_i32, %c0_i32_0 : i32, i32
  }
  func.func @transform_3(%arg0: i32, %arg1: memref<2xi32, #tpu.memory_space<smem>>) -> (i32, i32) {
    %c0_i32 = arith.constant 0 : i32
    %c0_i32_0 = arith.constant 0 : i32
    %c0_i32_1 = arith.constant 0 : i32
    return %c0_i32, %c0_i32_0 : i32, i32
  }
  func.func @transform_4(%arg0: i32, %arg1: memref<2xi32, #tpu.memory_space<smem>>) -> (i32, i32) {
    %c0_i32 = arith.constant 0 : i32
    %c0_i32_0 = arith.constant 0 : i32
    %c0_i32_1 = arith.constant 0 : i32
    return %c0_i32, %c0_i32_0 : i32, i32
  }
  func.func @transform_5(%arg0: i32, %arg1: memref<2xi32, #tpu.memory_space<smem>>) -> (i32, i32) {
    %c0_i32 = arith.constant 0 : i32
    %c0_i32_0 = arith.constant 0 : i32
    %c0_i32_1 = arith.constant 0 : i32
    return %c0_i32, %c0_i32_0 : i32, i32
  }
  func.func @transform_6(%arg0: i32, %arg1: memref<2xi32, #tpu.memory_space<smem>>) -> (i32, i32) {
    %c0_i32 = arith.constant 0 : i32
    %c0_i32_0 = arith.constant 0 : i32
    return %arg0, %c0_i32 : i32, i32
  }
}

</mosaic_0001>

<llo_original>
// kernel: tpu_custom_call.1
$region0: #{tpu_custom_call.1}
  #allocation0 [shape = 'u32[]', space=smem, size = 0x4, offset = 0x4, fixed_abs, tag = 'smem constant byte address 0x4 - core index']
  #allocation1 [shape = 'u32[144,128]{1,0:T(1,128)}', space=vmem, size = 0x12000, scoped, tag = 'internal scratch']
  #allocation2 [shape = 's32[1]{0}', space=sflag, size = 0x4, scoped, tag = 'scoped memory for tpu_custom_call.1']
  #allocation3 [shape = 'u8[512]{0}', space=smem, size = 0x200, scoped, tag = 'prefetched SMEM operand 0']
  %s0 = inlined_call_operand.hbm [shape: s32[2], index: 0, kind: input, shape index: {}]
  %s1 = inlined_call_operand.vmem [shape: f32[16,32], index: 1, kind: input, shape index: {}]
  %s2 = inlined_call_operand.vmem [shape: bf16[32,96], index: 2, kind: input, shape index: {}]
  %s3 = inlined_call_operand.vmem [shape: bf16[32,32], index: 3, kind: input, shape index: {}]
  %s4 = inlined_call_operand.hbm [shape: bf16[32,64], index: 4, kind: input, shape index: {}]
  %s5 = inlined_call_operand.vmem [shape: bf16[64,32], index: 5, kind: input, shape index: {}]
  %s6 = inlined_call_operand.hbm [shape: f32[6,64], index: 6, kind: input, shape index: {}]
  %s7 = inlined_call_operand.hbm [shape: f32[16,32], index: 7, kind: output, shape index: {}]
  %s8 = sld [smem:[#allocation0]]
  $region65: #{tpu_custom_call.1} parent=0
    _
  %s10 = ssub.s32 1, %s8
  %s11 = scalar_select 0, %s10, %s8
  %13 = dma.hbm_to_smem %s0, 16, [#allocation3], [#allocation2]
  %14 = dma.done [#allocation2], 16
  %15 = sfence
  $region1: #{tpu_custom_call.1} parent=0
    #allocation4 [shape = 'u8[8192]{0}', space=vmem, size = 0x2000, scoped, tag = 'input window, operand 4, single buffered']
    #allocation5 [shape = 's32[2]{0}', space=sflag, size = 0x8, scoped, tag = 'scoped memory for tpu_custom_call.1']
    #allocation6 [shape = 's32[2]{0}', space=sflag, size = 0x8, scoped, tag = 'scoped memory for tpu_custom_call.1']
    #allocation7 [shape = 'u8[4096]{0}', space=vmem, size = 0x1000, scoped, tag = 'input window, operand 6, single buffered']
    #allocation8 [shape = 's32[1]{0}', space=sflag, size = 0x4, scoped, tag = 'scoped memory for tpu_custom_call.1']
    #allocation9 [shape = 'u8[8192]{0}', space=vmem, size = 0x2000, scoped, tag = 'output window, operand 0']
    %16 = vsyncpa [#allocation5], 0
    %17 = vsyncpa [#allocation8], 0
    %18 = vsyncpa [#allocation6], 0
    %s19 = scalar_lea.sflag [#allocation6], 1
    %20 = vsyncpa %s19, 0
    loop: start=0, step=1, limit=4
    $region2: #{tpu_custom_call.1} parent=1 // loop_pre_header
      _
    $region3: #{tpu_custom_call.1} parent=1 // loop_header
      %s22 = sphi 0, %s26
      %p23 = scmp.ge.s32.totalorder %s22, 4
      %s32 = sphi 0, %s34
      %s35 = sphi 0, %s32
      %s36 = sphi 0, %s35
      %s52 = sphi 0, %s36
      %s56 = sphi 0, %s56
      %s58 = sphi 0, %s56
      %s59 = sphi 0, %s58
      %s73 = sphi 0, %s59
      %s77 = sphi 0, %s77
      %s79 = sphi 0, %s77
      %s80 = sphi 0, %s79
      %s94 = sphi 0, %s80
      %s98 = sphi 0, %s98
      %s100 = sphi 0, %s98
      %s101 = sphi 0, %s100
      %s115 = sphi 0, %s101
      %s119 = sphi 0, %s119
      %s121 = sphi 0, %s119
      %s122 = sphi 0, %s121
      %s136 = sphi 0, %s122
      %s140 = sphi 0, %s140
      %s142 = sphi 0, %s140
      %s143 = sphi 0, %s142
      %s157 = sphi 0, %s143
      %s163 = sphi 0, %s165
      %s166 = sphi 0, %s163
      %s167 = sphi 0, %s166
      %s183 = sphi 0, %s167
    $region4: #{tpu_custom_call.1} parent=1 // loop_header_branch
      %25 = sbr.rel (%p23) target = $region8
    $region5: #{tpu_custom_call.1} parent=1 // loop_body
      %s27 = ssub.s32 %s22, 1
      %s28 = ssub.s32 %s22, 2
      %s29 = sadd.s32 %s22, 1
      %s30 = ssub.s32 %s22, %s29
      %p31 = scmp.eq.s32.totalorder %s30, 0
      %s33 = sadd.s32 %s32, 1
      %s34 = scalar_select %p31, %s32, %s33
      %p37 = pneg %p31
      %p38 = scmp.eq.s32.totalorder %s22, 1
      %p39 = por %p37, %p38
      %p40 = scmp.ne.s32.totalorder %s32, %s35
      %p41 = scmp.eq.s32.totalorder %s22, 0
      %p42 = por %p40, %p41
      %p43 = scmp.ne.s32.totalorder %s32, %s35
      %p44 = scmp.eq.s32.totalorder %s27, 1
      %p45 = por %p43, %p44
      %p46 = scmp.ne.s32.totalorder %s35, %s36
      %p47 = scmp.eq.s32.totalorder %s27, 0
      %p48 = por %p46, %p47
      %p49 = scmp.ne.s32.totalorder %s35, %s36
      %p50 = scmp.eq.s32.totalorder %s28, 1
      %p51 = por %p49, %p50
      %p53 = scmp.ne.s32.totalorder %s36, %s52
      %p54 = scmp.eq.s32.totalorder %s28, 0
      %p55 = por %p53, %p54
      %s57 = sadd.s32 %s56, 1
      %p60 = scmp.eq.s32.totalorder %s22, 1
      %p61 = scmp.ne.s32.totalorder %s56, %s58
      %p62 = scmp.eq.s32.totalorder %s22, 0
      %p63 = por %p61, %p62
      %p64 = scmp.ne.s32.totalorder %s56, %s58
      %p65 = scmp.eq.s32.totalorder %s27, 1
      %p66 = por %p64, %p65
      %p67 = scmp.ne.s32.totalorder %s58, %s59
      %p68 = scmp.eq.s32.totalorder %s27, 0
      %p69 = por %p67, %p68
      %p70 = scmp.ne.s32.totalorder %s58, %s59
      %p71 = scmp.eq.s32.totalorder %s28, 1
      %p72 = por %p70, %p71
      %p74 = scmp.ne.s32.totalorder %s59, %s73
      %p75 = scmp.eq.s32.totalorder %s28, 0
      %p76 = por %p74, %p75
      %s78 = sadd.s32 %s77, 1
      %p81 = scmp.eq.s32.totalorder %s22, 1
      %p82 = scmp.ne.s32.totalorder %s77, %s79
      %p83 = scmp.eq.s32.totalorder %s22, 0
      %p84 = por %p82, %p83
      %p85 = scmp.ne.s32.totalorder %s77, %s79
      %p86 = scmp.eq.s32.totalorder %s27, 1
      %p87 = por %p85, %p86
      %p88 = scmp.ne.s32.totalorder %s79, %s80
      %p89 = scmp.eq.s32.totalorder %s27, 0
      %p90 = por %p88, %p89
      %p91 = scmp.ne.s32.totalorder %s79, %s80
      %p92 = scmp.eq.s32.totalorder %s28, 1
      %p93 = por %p91, %p92
      %p95 = scmp.ne.s32.totalorder %s80, %s94
      %p96 = scmp.eq.s32.totalorder %s28, 0
      %p97 = por %p95, %p96
      %s99 = sadd.s32 %s98, 1
      %p102 = scmp.eq.s32.totalorder %s22, 1
      %p103 = scmp.ne.s32.totalorder %s98, %s100
      %p104 = scmp.eq.s32.totalorder %s22, 0
      %p105 = por %p103, %p104
      %p106 = scmp.ne.s32.totalorder %s98, %s100
      %p107 = scmp.eq.s32.totalorder %s27, 1
      %p108 = por %p106, %p107
      %p109 = scmp.ne.s32.totalorder %s100, %s101
      %p110 = scmp.eq.s32.totalorder %s27, 0
      %p111 = por %p109, %p110
      %p112 = scmp.ne.s32.totalorder %s100, %s101
      %p113 = scmp.eq.s32.totalorder %s28, 1
      %p114 = por %p112, %p113
      %p116 = scmp.ne.s32.totalorder %s101, %s115
      %p117 = scmp.eq.s32.totalorder %s28, 0
      %p118 = por %p116, %p117
      %s120 = sadd.s32 %s119, 1
      %p123 = scmp.eq.s32.totalorder %s22, 1
      %p124 = scmp.ne.s32.totalorder %s119, %s121
      %p125 = scmp.eq.s32.totalorder %s22, 0
      %p126 = por %p124, %p125
      %p127 = scmp.ne.s32.totalorder %s119, %s121
      %p128 = scmp.eq.s32.totalorder %s27, 1
      %p129 = por %p127, %p128
      %p130 = scmp.ne.s32.totalorder %s121, %s122
      %p131 = scmp.eq.s32.totalorder %s27, 0
      %p132 = por %p130, %p131
      %p133 = scmp.ne.s32.totalorder %s121, %s122
      %p134 = scmp.eq.s32.totalorder %s28, 1
      %p135 = por %p133, %p134
      %p137 = scmp.ne.s32.totalorder %s122, %s136
      %p138 = scmp.eq.s32.totalorder %s28, 0
      %p139 = por %p137, %p138
      %s141 = sadd.s32 %s140, 1
      %p144 = scmp.eq.s32.totalorder %s22, 1
      %p145 = scmp.ne.s32.totalorder %s140, %s142
      %p146 = scmp.eq.s32.totalorder %s22, 0
      %p147 = por %p145, %p146
      %p148 = scmp.ne.s32.totalorder %s140, %s142
      %p149 = scmp.eq.s32.totalorder %s27, 1
      %p150 = por %p148, %p149
      %p151 = scmp.ne.s32.totalorder %s142, %s143
      %p152 = scmp.eq.s32.totalorder %s27, 0
      %p153 = por %p151, %p152
      %p154 = scmp.ne.s32.totalorder %s142, %s143
      %p155 = scmp.eq.s32.totalorder %s28, 1
      %p156 = por %p154, %p155
      %p158 = scmp.ne.s32.totalorder %s143, %s157
      %p159 = scmp.eq.s32.totalorder %s28, 0
      %p160 = por %p158, %p159
      %s161 = ssub.s32 %s22, %s29
      %p162 = scmp.eq.s32.totalorder %s161, 0
      %s164 = sadd.s32 %s163, 1
      %s165 = scalar_select %p162, %s163, %s164
      %p168 = pneg %p162
      %p169 = scmp.eq.s32.totalorder %s22, 1
      %p170 = por %p168, %p169
      %p171 = scmp.ne.s32.totalorder %s163, %s166
      %p172 = scmp.eq.s32.totalorder %s22, 0
      %p173 = por %p171, %p172
      %p174 = scmp.ne.s32.totalorder %s163, %s166
      %p175 = scmp.eq.s32.totalorder %s27, 1
      %p176 = por %p174, %p175
      %p177 = scmp.ne.s32.totalorder %s166, %s167
      %p178 = scmp.eq.s32.totalorder %s27, 0
      %p179 = por %p177, %p178
      %p180 = scmp.ne.s32.totalorder %s166, %s167
      %p181 = scmp.eq.s32.totalorder %s28, 1
      %p182 = por %p180, %p181
      %p184 = scmp.ne.s32.totalorder %s167, %s183
      %p185 = scmp.eq.s32.totalorder %s28, 0
      %p186 = por %p184, %p185
      %p187 = scmp.le.s32.totalorder 1, %s22
      %p188 = scmp.lt.s32.totalorder %s22, 3
      %p189 = pnand %p187, %p188
      %p190 = pneg %p189
      // Predicated region
      $region9: #{tpu_custom_call.1} parent=5 // pred_check
        _
      $region10: #{tpu_custom_call.1} parent=5 // pred_check_branch
        %192 = sbr.rel (%p189) target = $region12
      $region11: #{tpu_custom_call.1} parent=5 // pred_region
        %s193 = ssub.s32 %s22, 1
        // Predicated region
        $region13: #{tpu_custom_call.1} parent=11 // pred_check
          %p194 = pneg %p69
        $region14: #{tpu_custom_call.1} parent=11 // pred_check_branch
          %196 = sbr.rel (%p194) target = $region16
        $region15: #{tpu_custom_call.1} parent=11 // pred_region
          _
        $region16: #{tpu_custom_call.1} parent=11 // pred_fallthru
          _
        // Predicated region
        $region17: #{tpu_custom_call.1} parent=11 // pred_check
          %p197 = pneg %p90
        $region18: #{tpu_custom_call.1} parent=11 // pred_check_branch
          %199 = sbr.rel (%p197) target = $region20
        $region19: #{tpu_custom_call.1} parent=11 // pred_region
          _
        $region20: #{tpu_custom_call.1} parent=11 // pred_fallthru
          _
        // Predicated region
        $region21: #{tpu_custom_call.1} parent=11 // pred_check
          %p200 = pneg %p111
        $region22: #{tpu_custom_call.1} parent=11 // pred_check_branch
          %202 = sbr.rel (%p200) target = $region24
        $region23: #{tpu_custom_call.1} parent=11 // pred_region
          %s204 = ssub.s32 256, 256
          %205 = vsyncadd [#allocation5], %s204
          %s206 = sshll.u32 [#allocation4], 4
          %s207 = int_to_ptr.vmem [resolvable:$true] %s206
          %212 = dma.hbm_to_vmem [thread:$0]  %s4, 256, %s207, [#allocation5], 64, 64, 4
        $region24: #{tpu_custom_call.1} parent=11 // pred_fallthru
          _
        // Predicated region
        $region25: #{tpu_custom_call.1} parent=11 // pred_check
          %p213 = pneg %p132
        $region26: #{tpu_custom_call.1} parent=11 // pred_check_branch
          %215 = sbr.rel (%p213) target = $region28
        $region27: #{tpu_custom_call.1} parent=11 // pred_region
          _
        $region28: #{tpu_custom_call.1} parent=11 // pred_fallthru
          _
        // Predicated region
        $region29: #{tpu_custom_call.1} parent=11 // pred_check
          %p216 = pneg %p153
        $region30: #{tpu_custom_call.1} parent=11 // pred_check_branch
          %218 = sbr.rel (%p216) target = $region32
        $region31: #{tpu_custom_call.1} parent=11 // pred_region
          %s220 = ssub.s32 128, 128
          %221 = vsyncadd [#allocation8], %s220
          %s223 = sshll.u32 [#allocation7], 4
          %s224 = int_to_ptr.vmem [resolvable:$true] %s223
          %226 = dma.hbm_to_vmem [thread:$0]  %s6, 128, %s224, [#allocation8]
        $region32: #{tpu_custom_call.1} parent=11 // pred_fallthru
          _
      $region12: #{tpu_custom_call.1} parent=5 // pred_fallthru
        _
      %p227 = scmp.lt.s32.totalorder %s22, 2
      // Predicated region
      $region33: #{tpu_custom_call.1} parent=5 // pred_check
        %p228 = pneg %p227
      $region34: #{tpu_custom_call.1} parent=5 // pred_check_branch
        %230 = sbr.rel (%p228) target = $region36
      $region35: #{tpu_custom_call.1} parent=5 // pred_region
        // Predicated region
        $region37: #{tpu_custom_call.1} parent=35 // pred_check
          %p231 = pneg %p42
        $region38: #{tpu_custom_call.1} parent=35 // pred_check_branch
          %233 = sbr.rel (%p231) target = $region40
        $region39: #{tpu_custom_call.1} parent=35 // pred_region
          %p234 = scmp.lt.s32.totalorder %s22, 1
          %s235 = scalar_select %p234, %s22, 1
          %s236 = smul.addr %s235, 8
          %s237 = scalar_lea.vmem %s1, %s236
        $region40: #{tpu_custom_call.1} parent=35 // pred_fallthru
          _
      $region36: #{tpu_custom_call.1} parent=5 // pred_fallthru
        _
      %p238 = scmp.le.s32.totalorder 1, %s22
      %p239 = scmp.lt.s32.totalorder %s22, 3
      %p240 = pnand %p238, %p239
      %p241 = pneg %p240
      // Predicated region
      $region41: #{tpu_custom_call.1} parent=5 // pred_check
        _
      $region42: #{tpu_custom_call.1} parent=5 // pred_check_branch
        %243 = sbr.rel (%p240) target = $region44
      $region43: #{tpu_custom_call.1} parent=5 // pred_region
        %s244 = ssub.s32 %s22, 1
        // Predicated region
        $region45: #{tpu_custom_call.1} parent=43 // pred_check
          %p245 = pneg %p111
        $region46: #{tpu_custom_call.1} parent=43 // pred_check_branch
          %247 = sbr.rel (%p245) target = $region48
        $region47: #{tpu_custom_call.1} parent=43 // pred_region
          %248 = dma.done [#allocation5], 256
        $region48: #{tpu_custom_call.1} parent=43 // pred_fallthru
          _
        // Predicated region
        $region49: #{tpu_custom_call.1} parent=43 // pred_check
          %p249 = pneg %p153
        $region50: #{tpu_custom_call.1} parent=43 // pred_check_branch
          %251 = sbr.rel (%p249) target = $region52
        $region51: #{tpu_custom_call.1} parent=43 // pred_region
          %252 = dma.done [#allocation8], 128
        $region52: #{tpu_custom_call.1} parent=43 // pred_fallthru
          _
        %p253 = scmp.lt.s32.totalorder %s27, 1
        %s254 = scalar_select %p253, %s27, 1
        %s255 = smul.addr %s254, 8
        %s256 = scalar_lea.vmem %s1, %s255
        %p257 = pneg %p48
        %p258 = pneg %p45
        %p259 = pneg %p69
        %p260 = pneg %p66
        %p261 = pneg %p90
        %p262 = pneg %p87
        %p263 = pneg %p111
        %p264 = pneg %p108
        %p265 = pneg %p132
        %p266 = pneg %p129
        %p267 = pneg %p153
        %p268 = pneg %p150
        %p269 = pneg %p179
        %p270 = pneg %p176
        %s271 = sand.u32 %s166, 1
        %s272 = scalar_lea.sflag [#allocation6], %s271
        %s273 = sand.u32 %s166, 1
        %s274 = smul.addr %s273, 8
        %s275 = scalar_lea.vmem [#allocation9], %s274
        %p276 = scmp.lt.s32.totalorder %s27, 1
        %s277 = scalar_select %p276, %s27, 1
        %s278 = smul.addr %s277, 8
        %s279 = scalar_lea.vmem %s1, %s278
        %v281 = vld [vmem:[%s279] sm:$0xff]
        %v282 = vpack.c.bf16 %v281, %v281
        %v283 = vld [vmem:[%s2] sm:$0xf]
        %v284 = vld [vmem:[%s2 + $0x4] sm:$0xf]
        %v285 = vld [vmem:[%s2 + $0x8] sm:$0xf]
        %v286 = vld [vmem:[%s2 + $0xc] sm:$0xf]
        %v291 = vunpack.c.l.b16 %v283
        %v292 = vunpack.c.l.b16 %v284
        %v293 = vunpack.c.l.b16 %v285
        %v294 = vunpack.c.l.b16 %v286
        %v295 = vpack.c.b16 %v292, %v291
        %v296 = vpack.c.b16 %v294, %v293
        %vm299 = vcmask 261120
        %v301 = vsel %vm299, %v282, 0
        %303 = vmatprep.subr.bf16.mxu0 0
        %304 = vmatpush1.bf16.msra.mxu0 %v295
        %305 = vmatprep.subr.bf16.mxu0 0
        %306 = vmatpush1.bf16.msra.mxu0 %v296
        %307 = vmatprep.subr.bf16.mxu0 0
        %308 = vmatpush1.bf16.msra.mxu0 0
        %309 = vmatprep.subr.bf16.mxu0 0
        %310 = vmatpush1.bf16.msra.mxu0 0
        %311 = vmatprep.subr.bf16.mxu0 0
        %312 = vmatpush1.bf16.msra.mxu0 0
        %313 = vmatprep.subr.bf16.mxu0 0
        %314 = vmatpush1.bf16.msra.mxu0 0
        %315 = vmatprep.subr.bf16.mxu0 0
        %316 = vmatpush1.bf16.msra.mxu0 0
        %317 = vmatprep.subr.bf16.mxu0 0
        %318 = vmatpush1.bf16.msra.mxu0 0
        %319 = vmatprep.subr.bf16.mxu0 0
        %320 = vmatpush1.bf16.msra.mxu0 0
        %321 = vmatprep.subr.bf16.mxu0 0
        %322 = vmatpush1.bf16.msra.mxu0 0
        %323 = vmatprep.subr.bf16.mxu0 0
        %324 = vmatpush1.bf16.msra.mxu0 0
        %325 = vmatprep.subr.bf16.mxu0 0
        %326 = vmatpush1.bf16.msra.mxu0 0
        %327 = vmatprep.subr.bf16.mxu0 0
        %328 = vmatpush1.bf16.msra.mxu0 0
        %329 = vmatprep.subr.bf16.mxu0 0
        %330 = vmatpush1.bf16.msra.mxu0 0
        %331 = vmatprep.subr.bf16.mxu0 0
        %332 = vmatpush1.bf16.msra.mxu0 0
        %333 = vmatprep.subr.bf16.mxu0 0
        %334 = vmatpush1.bf16.msra.mxu0 0
        %335 = vmatprep.mubr.bf16.mxu0 0
        %336 = vmatmul.mubr.bf16.gmra.mrb[0].mxu0 %v301
        %v337 = vpop.f32.mrb[0].mxu0
        %v338 = vadd.f32 0.0, %v337
        %v339 = vpop.f32.mrb[0].mxu0
        %v340 = vpop.f32.mrb[0].mxu0
        %v341 = vpop.f32.mrb[0].mxu0
        %342 = vdwg.mxu0
        %v343 = vmul.f32 %v338, 0.35355338
        %345 = vrot.lane.b32.xlu0 %v343, 120
        %v346 = vpop.permute.xlu0 %345
        %348 = vrot.lane.b32.xlu0 %v343, 112
        %v349 = vpop.permute.xlu0 %348
        %351 = vrot.lane.b32.xlu0 %v343, 104
        %v352 = vpop.permute.xlu0 %351
        %v354 = vcombine.low %v343, %v349
        %v355 = vcombine.high %v343, %v349
        %v357 = vunpack.c.l.s4 1983009808
        %v358 = vunpack.c.0.s8 %v357
        %v359 = vlaneseq
        %v360 = vshrl.u32 %v359, 7
        %v361 = vsub.s32 %v358, %v360
        %v362 = vrot.slane %v354, %v361
        %v364 = vunpack.c.l.s4 1983009808
        %v365 = vunpack.c.0.s8 %v364
        %v366 = vlaneseq
        %v367 = vshrl.u32 %v366, 7
        %v368 = vsub.s32 %v365, %v367
        %v369 = vrot.slane %v355, %v368
        %v370 = vcombine.low %v346, %v352
        %v371 = vcombine.high %v346, %v352
        %v373 = vunpack.c.l.s4 1983009808
        %v374 = vunpack.c.0.s8 %v373
        %v375 = vlaneseq
        %v376 = vshrl.u32 %v375, 7
        %v377 = vsub.s32 %v374, %v376
        %v378 = vrot.slane %v370, %v377
        %v380 = vunpack.c.l.s4 1983009808
        %v381 = vunpack.c.0.s8 %v380
        %v382 = vlaneseq
        %v383 = vshrl.u32 %v382, 7
        %v384 = vsub.s32 %v381, %v383
        %v385 = vrot.slane %v371, %v384
        %v386 = vcombine.low %v362, %v378
        %v387 = vcombine.high %v362, %v378
        %v389 = vunpack.c.l.s4 1934713408
        %v390 = vunpack.c.0.s8 %v389
        %v391 = vlaneseq
        %v392 = vshrl.u32 %v391, 7
        %v393 = vsub.s32 %v390, %v392
        %v394 = vrot.slane %v386, %v393
        %v396 = vunpack.c.l.s4 1934713408
        %v397 = vunpack.c.0.s8 %v396
        %v398 = vlaneseq
        %v399 = vshrl.u32 %v398, 7
        %v400 = vsub.s32 %v397, %v399
        %v401 = vrot.slane %v387, %v400
        %v402 = vcombine.low %v369, %v385
        %v403 = vcombine.high %v369, %v385
        %v405 = vunpack.c.l.s4 1934713408
        %v406 = vunpack.c.0.s8 %v405
        %v407 = vlaneseq
        %v408 = vshrl.u32 %v407, 7
        %v409 = vsub.s32 %v406, %v408
        %v410 = vrot.slane %v402, %v409
        %v412 = vunpack.c.l.s4 1934713408
        %v413 = vunpack.c.0.s8 %v412
        %v414 = vlaneseq
        %v415 = vshrl.u32 %v414, 7
        %v416 = vsub.s32 %v413, %v415
        %v417 = vrot.slane %v403, %v416
        %v418 = vcombine.high %v394, 0.0
        %v419 = vcombine.high %v401, 0.0
        %v420 = vcombine.high %v410, 0.0
        %v421 = vcombine.high %v417, 0.0
        %423 = vrot.lane.b32.xlu0 %v338, 120
        %v424 = vpop.permute.xlu0 %423
        %425 = vrot.lane.b32.xlu0 %v338, 112
        %v426 = vpop.permute.xlu0 %425
        %427 = vrot.lane.b32.xlu0 %v338, 104
        %v428 = vpop.permute.xlu0 %427
        %429 = vrot.lane.b32.xlu0 %v338, 96
        %v430 = vpop.permute.xlu0 %429
        %431 = vrot.lane.b32.xlu0 %v424, 96
        %v432 = vpop.permute.xlu0 %431
        %433 = vrot.lane.b32.xlu0 %v426, 96
        %v434 = vpop.permute.xlu0 %433
        %435 = vrot.lane.b32.xlu0 %v428, 96
        %v436 = vpop.permute.xlu0 %435
        %v441 = vcombine.low %v430, %v434
        %v442 = vcombine.high %v430, %v434
        %v444 = vunpack.c.l.s4 1983009808
        %v445 = vunpack.c.0.s8 %v444
        %v446 = vlaneseq
        %v447 = vshrl.u32 %v446, 7
        %v448 = vsub.s32 %v445, %v447
        %v449 = vrot.slane %v441, %v448
        %v451 = vunpack.c.l.s4 1983009808
        %v452 = vunpack.c.0.s8 %v451
        %v453 = vlaneseq
        %v454 = vshrl.u32 %v453, 7
        %v455 = vsub.s32 %v452, %v454
        %v456 = vrot.slane %v442, %v455
        %v457 = vcombine.low %v432, %v436
        %v458 = vcombine.high %v432, %v436
        %v460 = vunpack.c.l.s4 1983009808
        %v461 = vunpack.c.0.s8 %v460
        %v462 = vlaneseq
        %v463 = vshrl.u32 %v462, 7
        %v464 = vsub.s32 %v461, %v463
        %v465 = vrot.slane %v457, %v464
        %v467 = vunpack.c.l.s4 1983009808
        %v468 = vunpack.c.0.s8 %v467
        %v469 = vlaneseq
        %v470 = vshrl.u32 %v469, 7
        %v471 = vsub.s32 %v468, %v470
        %v472 = vrot.slane %v458, %v471
        %v473 = vcombine.low %v449, %v465
        %v474 = vcombine.high %v449, %v465
        %v476 = vunpack.c.l.s4 1934713408
        %v477 = vunpack.c.0.s8 %v476
        %v478 = vlaneseq
        %v479 = vshrl.u32 %v478, 7
        %v480 = vsub.s32 %v477, %v479
        %v481 = vrot.slane %v473, %v480
        %v483 = vunpack.c.l.s4 1934713408
        %v484 = vunpack.c.0.s8 %v483
        %v485 = vlaneseq
        %v486 = vshrl.u32 %v485, 7
        %v487 = vsub.s32 %v484, %v486
        %v488 = vrot.slane %v474, %v487
        %v489 = vcombine.low %v456, %v472
        %v490 = vcombine.high %v456, %v472
        %v492 = vunpack.c.l.s4 1934713408
        %v493 = vunpack.c.0.s8 %v492
        %v494 = vlaneseq
        %v495 = vshrl.u32 %v494, 7
        %v496 = vsub.s32 %v493, %v495
        %v497 = vrot.slane %v489, %v496
        %v499 = vunpack.c.l.s4 1934713408
        %v500 = vunpack.c.0.s8 %v499
        %v501 = vlaneseq
        %v502 = vshrl.u32 %v501, 7
        %v503 = vsub.s32 %v500, %v502
        %v504 = vrot.slane %v490, %v503
        %v505 = vcombine.high %v481, 0.0
        %v506 = vcombine.high %v488, 0.0
        %v507 = vcombine.high %v497, 0.0
        %v508 = vcombine.high %v504, 0.0
        %509 = vrot.lane.b32.xlu0 %v338, 64
        %v510 = vpop.permute.xlu0 %509
        %511 = vrot.lane.b32.xlu0 %v424, 64
        %v512 = vpop.permute.xlu0 %511
        %513 = vrot.lane.b32.xlu0 %v426, 64
        %v514 = vpop.permute.xlu0 %513
        %515 = vrot.lane.b32.xlu0 %v428, 64
        %v516 = vpop.permute.xlu0 %515
        %v521 = vcombine.low %v510, %v514
        %v522 = vcombine.high %v510, %v514
        %v524 = vunpack.c.l.s4 1983009808
        %v525 = vunpack.c.0.s8 %v524
        %v526 = vlaneseq
        %v527 = vshrl.u32 %v526, 7
        %v528 = vsub.s32 %v525, %v527
        %v529 = vrot.slane %v521, %v528
        %v531 = vunpack.c.l.s4 1983009808
        %v532 = vunpack.c.0.s8 %v531
        %v533 = vlaneseq
        %v534 = vshrl.u32 %v533, 7
        %v535 = vsub.s32 %v532, %v534
        %v536 = vrot.slane %v522, %v535
        %v537 = vcombine.low %v512, %v516
        %v538 = vcombine.high %v512, %v516
        %v540 = vunpack.c.l.s4 1983009808
        %v541 = vunpack.c.0.s8 %v540
        %v542 = vlaneseq
        %v543 = vshrl.u32 %v542, 7
        %v544 = vsub.s32 %v541, %v543
        %v545 = vrot.slane %v537, %v544
        %v547 = vunpack.c.l.s4 1983009808
        %v548 = vunpack.c.0.s8 %v547
        %v549 = vlaneseq
        %v550 = vshrl.u32 %v549, 7
        %v551 = vsub.s32 %v548, %v550
        %v552 = vrot.slane %v538, %v551
        %v553 = vcombine.low %v529, %v545
        %v554 = vcombine.high %v529, %v545
        %v556 = vunpack.c.l.s4 1934713408
        %v557 = vunpack.c.0.s8 %v556
        %v558 = vlaneseq
        %v559 = vshrl.u32 %v558, 7
        %v560 = vsub.s32 %v557, %v559
        %v561 = vrot.slane %v553, %v560
        %v563 = vunpack.c.l.s4 1934713408
        %v564 = vunpack.c.0.s8 %v563
        %v565 = vlaneseq
        %v566 = vshrl.u32 %v565, 7
        %v567 = vsub.s32 %v564, %v566
        %v568 = vrot.slane %v554, %v567
        %v569 = vcombine.low %v536, %v552
        %v570 = vcombine.high %v536, %v552
        %v572 = vunpack.c.l.s4 1934713408
        %v573 = vunpack.c.0.s8 %v572
        %v574 = vlaneseq
        %v575 = vshrl.u32 %v574, 7
        %v576 = vsub.s32 %v573, %v575
        %v577 = vrot.slane %v569, %v576
        %v579 = vunpack.c.l.s4 1934713408
        %v580 = vunpack.c.0.s8 %v579
        %v581 = vlaneseq
        %v582 = vshrl.u32 %v581, 7
        %v583 = vsub.s32 %v580, %v582
        %v584 = vrot.slane %v570, %v583
        %v585 = vcombine.high %v561, 0.0
        %v586 = vcombine.high %v568, 0.0
        %v587 = vcombine.high %v577, 0.0
        %v588 = vcombine.high %v584, 0.0
        %v589 = vcombine.low %v394, %v401
        %v591 = vunpack.c.l.s4 1983009808
        %v592 = vunpack.c.0.s8 %v591
        %v593 = vlaneseq
        %v594 = vshrl.u32 %v593, 7
        %v595 = vsub.s32 %v592, %v594
        %v596 = vrot.slane %v589, %v595
        %v597 = vcombine.low %v418, %v419
        %v599 = vunpack.c.l.s4 1983009808
        %v600 = vunpack.c.0.s8 %v599
        %v601 = vlaneseq
        %v602 = vshrl.u32 %v601, 7
        %v603 = vsub.s32 %v600, %v602
        %v604 = vrot.slane %v597, %v603
        %v605 = vcombine.low %v410, %v417
        %v607 = vunpack.c.l.s4 1983009808
        %v608 = vunpack.c.0.s8 %v607
        %v609 = vlaneseq
        %v610 = vshrl.u32 %v609, 7
        %v611 = vsub.s32 %v608, %v610
        %v612 = vrot.slane %v605, %v611
        %v613 = vcombine.low %v420, %v421
        %v615 = vunpack.c.l.s4 1983009808
        %v616 = vunpack.c.0.s8 %v615
        %v617 = vlaneseq
        %v618 = vshrl.u32 %v617, 7
        %v619 = vsub.s32 %v616, %v618
        %v620 = vrot.slane %v613, %v619
        %v621 = vcombine.low %v596, %v604
        %v622 = vcombine.high %v596, %v604
        %v624 = vunpack.c.l.s4 1934713408
        %v625 = vunpack.c.0.s8 %v624
        %v626 = vlaneseq
        %v627 = vshrl.u32 %v626, 7
        %v628 = vsub.s32 %v625, %v627
        %v629 = vrot.slane %v621, %v628
        %v631 = vunpack.c.l.s4 1934713408
        %v632 = vunpack.c.0.s8 %v631
        %v633 = vlaneseq
        %v634 = vshrl.u32 %v633, 7
        %v635 = vsub.s32 %v632, %v634
        %v636 = vrot.slane %v622, %v635
        %v637 = vcombine.low %v612, %v620
        %v638 = vcombine.high %v612, %v620
        %v640 = vunpack.c.l.s4 1934713408
        %v641 = vunpack.c.0.s8 %v640
        %v642 = vlaneseq
        %v643 = vshrl.u32 %v642, 7
        %v644 = vsub.s32 %v641, %v643
        %v645 = vrot.slane %v637, %v644
        %v647 = vunpack.c.l.s4 1934713408
        %v648 = vunpack.c.0.s8 %v647
        %v649 = vlaneseq
        %v650 = vshrl.u32 %v649, 7
        %v651 = vsub.s32 %v648, %v650
        %v652 = vrot.slane %v638, %v651
        %v653 = vcombine.low %v629, %v645
        %v654 = vcombine.high %v629, %v645
        %v655 = vcombine.low %v636, %v652
        %v656 = vcombine.high %v636, %v652
        %v657 = vpack.c.bf16 %v653, %v653
        %v658 = vpack.c.bf16 %v654, %v654
        %v659 = vpack.c.bf16 %v655, %v655
        %v660 = vpack.c.bf16 %v656, %v656
        %v661 = vcombine.low %v481, %v488
        %v663 = vunpack.c.l.s4 1983009808
        %v664 = vunpack.c.0.s8 %v663
        %v665 = vlaneseq
        %v666 = vshrl.u32 %v665, 7
        %v667 = vsub.s32 %v664, %v666
        %v668 = vrot.slane %v661, %v667
        %v669 = vcombine.low %v505, %v506
        %v671 = vunpack.c.l.s4 1983009808
        %v672 = vunpack.c.0.s8 %v671
        %v673 = vlaneseq
        %v674 = vshrl.u32 %v673, 7
        %v675 = vsub.s32 %v672, %v674
        %v676 = vrot.slane %v669, %v675
        %v677 = vcombine.low %v497, %v504
        %v679 = vunpack.c.l.s4 1983009808
        %v680 = vunpack.c.0.s8 %v679
        %v681 = vlaneseq
        %v682 = vshrl.u32 %v681, 7
        %v683 = vsub.s32 %v680, %v682
        %v684 = vrot.slane %v677, %v683
        %v685 = vcombine.low %v507, %v508
        %v687 = vunpack.c.l.s4 1983009808
        %v688 = vunpack.c.0.s8 %v687
        %v689 = vlaneseq
        %v690 = vshrl.u32 %v689, 7
        %v691 = vsub.s32 %v688, %v690
        %v692 = vrot.slane %v685, %v691
        %v693 = vcombine.low %v668, %v676
        %v694 = vcombine.high %v668, %v676
        %v696 = vunpack.c.l.s4 1934713408
        %v697 = vunpack.c.0.s8 %v696
        %v698 = vlaneseq
        %v699 = vshrl.u32 %v698, 7
        %v700 = vsub.s32 %v697, %v699
        %v701 = vrot.slane %v693, %v700
        %v703 = vunpack.c.l.s4 1934713408
        %v704 = vunpack.c.0.s8 %v703
        %v705 = vlaneseq
        %v706 = vshrl.u32 %v705, 7
        %v707 = vsub.s32 %v704, %v706
        %v708 = vrot.slane %v694, %v707
        %v709 = vcombine.low %v684, %v692
        %v710 = vcombine.high %v684, %v692
        %v712 = vunpack.c.l.s4 1934713408
        %v713 = vunpack.c.0.s8 %v712
        %v714 = vlaneseq
        %v715 = vshrl.u32 %v714, 7
        %v716 = vsub.s32 %v713, %v715
        %v717 = vrot.slane %v709, %v716
        %v719 = vunpack.c.l.s4 1934713408
        %v720 = vunpack.c.0.s8 %v719
        %v721 = vlaneseq
        %v722 = vshrl.u32 %v721, 7
        %v723 = vsub.s32 %v720, %v722
        %v724 = vrot.slane %v710, %v723
        %v725 = vcombine.low %v701, %v717
        %v726 = vcombine.high %v701, %v717
        %v727 = vcombine.low %v708, %v724
        %v728 = vcombine.high %v708, %v724
        %v729 = vpack.c.bf16 %v725, %v725
        %v730 = vpack.c.bf16 %v726, %v726
        %v731 = vpack.c.bf16 %v727, %v727
        %v732 = vpack.c.bf16 %v728, %v728
        %v733 = vcombine.low %v561, %v568
        %v735 = vunpack.c.l.s4 1983009808
        %v736 = vunpack.c.0.s8 %v735
        %v737 = vlaneseq
        %v738 = vshrl.u32 %v737, 7
        %v739 = vsub.s32 %v736, %v738
        %v740 = vrot.slane %v733, %v739
        %v741 = vcombine.low %v585, %v586
        %v743 = vunpack.c.l.s4 1983009808
        %v744 = vunpack.c.0.s8 %v743
        %v745 = vlaneseq
        %v746 = vshrl.u32 %v745, 7
        %v747 = vsub.s32 %v744, %v746
        %v748 = vrot.slane %v741, %v747
        %v749 = vcombine.low %v577, %v584
        %v751 = vunpack.c.l.s4 1983009808
        %v752 = vunpack.c.0.s8 %v751
        %v753 = vlaneseq
        %v754 = vshrl.u32 %v753, 7
        %v755 = vsub.s32 %v752, %v754
        %v756 = vrot.slane %v749, %v755
        %v757 = vcombine.low %v587, %v588
        %v759 = vunpack.c.l.s4 1983009808
        %v760 = vunpack.c.0.s8 %v759
        %v761 = vlaneseq
        %v762 = vshrl.u32 %v761, 7
        %v763 = vsub.s32 %v760, %v762
        %v764 = vrot.slane %v757, %v763
        %v765 = vcombine.low %v740, %v748
        %v766 = vcombine.high %v740, %v748
        %v768 = vunpack.c.l.s4 1934713408
        %v769 = vunpack.c.0.s8 %v768
        %v770 = vlaneseq
        %v771 = vshrl.u32 %v770, 7
        %v772 = vsub.s32 %v769, %v771
        %v773 = vrot.slane %v765, %v772
        %v775 = vunpack.c.l.s4 1934713408
        %v776 = vunpack.c.0.s8 %v775
        %v777 = vlaneseq
        %v778 = vshrl.u32 %v777, 7
        %v779 = vsub.s32 %v776, %v778
        %v780 = vrot.slane %v766, %v779
        %v781 = vcombine.low %v756, %v764
        %v782 = vcombine.high %v756, %v764
        %v784 = vunpack.c.l.s4 1934713408
        %v785 = vunpack.c.0.s8 %v784
        %v786 = vlaneseq
        %v787 = vshrl.u32 %v786, 7
        %v788 = vsub.s32 %v785, %v787
        %v789 = vrot.slane %v781, %v788
        %v791 = vunpack.c.l.s4 1934713408
        %v792 = vunpack.c.0.s8 %v791
        %v793 = vlaneseq
        %v794 = vshrl.u32 %v793, 7
        %v795 = vsub.s32 %v792, %v794
        %v796 = vrot.slane %v782, %v795
        %v797 = vcombine.low %v773, %v789
        %v798 = vcombine.high %v773, %v789
        %v799 = vcombine.low %v780, %v796
        %v800 = vcombine.high %v780, %v796
        %v801 = vpack.c.bf16 %v797, %v797
        %v802 = vpack.c.bf16 %v798, %v798
        %v803 = vpack.c.bf16 %v799, %v799
        %v804 = vpack.c.bf16 %v800, %v800
        %s805 = sld [smem:[#allocation3 + %s27]]
        %v806 = vlaneseq
        %v807 = vand.u32 %v806, 127
        %v808 = vstv %s805
        %vm809 = vcmp.lt.s32.totalorder %v807, %v808
        %v810 = vsel %vm809, 0.0, -1e+09
        %vm811 = vcmask 64512
        %v813 = vsel %vm811, %v657, 0
        %v816 = vsel %vm811, %v729, 0
        %818 = vmatprep.subr.bf16.mxu0 0
        %819 = vmatpush1.bf16.xpose.msra.mxu0 %v816
        %820 = vmatprep.subr.bf16.mxu0 0
        %821 = vmatpush1.bf16.xpose.msra.mxu0 0
        %822 = vmatprep.subr.bf16.mxu0 0
        %823 = vmatpush1.bf16.xpose.msra.mxu0 0
        %824 = vmatprep.subr.bf16.mxu0 0
        %825 = vmatpush1.bf16.xpose.msra.mxu0 0
        %826 = vmatprep.subr.bf16.mxu0 0
        %827 = vmatpush1.bf16.xpose.msra.mxu0 0
        %828 = vmatprep.subr.bf16.mxu0 0
        %829 = vmatpush1.bf16.xpose.msra.mxu0 0
        %830 = vmatprep.subr.bf16.mxu0 0
        %831 = vmatpush1.bf16.xpose.msra.mxu0 0
        %832 = vmatprep.subr.bf16.mxu0 0
        %833 = vmatpush1.bf16.xpose.msra.mxu0 0
        %834 = vmatprep.subr.bf16.mxu0 0
        %835 = vmatpush1.bf16.xpose.msra.mxu0 0
        %836 = vmatprep.subr.bf16.mxu0 0
        %837 = vmatpush1.bf16.xpose.msra.mxu0 0
        %838 = vmatprep.subr.bf16.mxu0 0
        %839 = vmatpush1.bf16.xpose.msra.mxu0 0
        %840 = vmatprep.subr.bf16.mxu0 0
        %841 = vmatpush1.bf16.xpose.msra.mxu0 0
        %842 = vmatprep.subr.bf16.mxu0 0
        %843 = vmatpush1.bf16.xpose.msra.mxu0 0
        %844 = vmatprep.subr.bf16.mxu0 0
        %845 = vmatpush1.bf16.xpose.msra.mxu0 0
        %846 = vmatprep.subr.bf16.mxu0 0
        %847 = vmatpush1.bf16.xpose.msra.mxu0 0
        %848 = vmatprep.subr.bf16.mxu0 0
        %849 = vmatpush1.bf16.xpose.msra.mxu0 0
        %850 = vmatprep.mubr.bf16.mxu0 0
        %851 = vmatmul.mubr.bf16.gmra.mrb[0].mxu0 %v813
        %v852 = vpop.f32.mrb[0].mxu0
        %v853 = vadd.f32 %v810, %v852
        %v854 = vpop.f32.mrb[0].mxu0
        %v855 = vpop.f32.mrb[0].mxu0
        %v856 = vpop.f32.mrb[0].mxu0
        %857 = vdwg.mxu0
        %v859 = vsel %vm811, %v658, 0
        %v862 = vsel %vm811, %v730, 0
        %864 = vmatprep.subr.bf16.mxu0 0
        %865 = vmatpush1.bf16.xpose.msra.mxu0 %v862
        %866 = vmatprep.subr.bf16.mxu0 0
        %867 = vmatpush1.bf16.xpose.msra.mxu0 0
        %868 = vmatprep.subr.bf16.mxu0 0
        %869 = vmatpush1.bf16.xpose.msra.mxu0 0
        %870 = vmatprep.subr.bf16.mxu0 0
        %871 = vmatpush1.bf16.xpose.msra.mxu0 0
        %872 = vmatprep.subr.bf16.mxu0 0
        %873 = vmatpush1.bf16.xpose.msra.mxu0 0
        %874 = vmatprep.subr.bf16.mxu0 0
        %875 = vmatpush1.bf16.xpose.msra.mxu0 0
        %876 = vmatprep.subr.bf16.mxu0 0
        %877 = vmatpush1.bf16.xpose.msra.mxu0 0
        %878 = vmatprep.subr.bf16.mxu0 0
        %879 = vmatpush1.bf16.xpose.msra.mxu0 0
        %880 = vmatprep.subr.bf16.mxu0 0
        %881 = vmatpush1.bf16.xpose.msra.mxu0 0
        %882 = vmatprep.subr.bf16.mxu0 0
        %883 = vmatpush1.bf16.xpose.msra.mxu0 0
        %884 = vmatprep.subr.bf16.mxu0 0
        %885 = vmatpush1.bf16.xpose.msra.mxu0 0
        %886 = vmatprep.subr.bf16.mxu0 0
        %887 = vmatpush1.bf16.xpose.msra.mxu0 0
        %888 = vmatprep.subr.bf16.mxu0 0
        %889 = vmatpush1.bf16.xpose.msra.mxu0 0
        %890 = vmatprep.subr.bf16.mxu0 0
        %891 = vmatpush1.bf16.xpose.msra.mxu0 0
        %892 = vmatprep.subr.bf16.mxu0 0
        %893 = vmatpush1.bf16.xpose.msra.mxu0 0
        %894 = vmatprep.subr.bf16.mxu0 0
        %895 = vmatpush1.bf16.xpose.msra.mxu0 0
        %896 = vmatprep.mubr.bf16.mxu0 0
        %897 = vmatmul.mubr.bf16.gmra.mrb[0].mxu0 %v859
        %v898 = vpop.f32.mrb[0].mxu0
        %v899 = vadd.f32 %v810, %v898
        %v900 = vpop.f32.mrb[0].mxu0
        %v901 = vpop.f32.mrb[0].mxu0
        %v902 = vpop.f32.mrb[0].mxu0
        %903 = vdwg.mxu0
        %v905 = vsel %vm811, %v659, 0
        %v908 = vsel %vm811, %v731, 0
        %910 = vmatprep.subr.bf16.mxu0 0
        %911 = vmatpush1.bf16.xpose.msra.mxu0 %v908
        %912 = vmatprep.subr.bf16.mxu0 0
        %913 = vmatpush1.bf16.xpose.msra.mxu0 0
        %914 = vmatprep.subr.bf16.mxu0 0
        %915 = vmatpush1.bf16.xpose.msra.mxu0 0
        %916 = vmatprep.subr.bf16.mxu0 0
        %917 = vmatpush1.bf16.xpose.msra.mxu0 0
        %918 = vmatprep.subr.bf16.mxu0 0
        %919 = vmatpush1.bf16.xpose.msra.mxu0 0
        %920 = vmatprep.subr.bf16.mxu0 0
        %921 = vmatpush1.bf16.xpose.msra.mxu0 0
        %922 = vmatprep.subr.bf16.mxu0 0
        %923 = vmatpush1.bf16.xpose.msra.mxu0 0
        %924 = vmatprep.subr.bf16.mxu0 0
        %925 = vmatpush1.bf16.xpose.msra.mxu0 0
        %926 = vmatprep.subr.bf16.mxu0 0
        %927 = vmatpush1.bf16.xpose.msra.mxu0 0
        %928 = vmatprep.subr.bf16.mxu0 0
        %929 = vmatpush1.bf16.xpose.msra.mxu0 0
        %930 = vmatprep.subr.bf16.mxu0 0
        %931 = vmatpush1.bf16.xpose.msra.mxu0 0
        %932 = vmatprep.subr.bf16.mxu0 0
        %933 = vmatpush1.bf16.xpose.msra.mxu0 0
        %934 = vmatprep.subr.bf16.mxu0 0
        %935 = vmatpush1.bf16.xpose.msra.mxu0 0
        %936 = vmatprep.subr.bf16.mxu0 0
        %937 = vmatpush1.bf16.xpose.msra.mxu0 0
        %938 = vmatprep.subr.bf16.mxu0 0
        %939 = vmatpush1.bf16.xpose.msra.mxu0 0
        %940 = vmatprep.subr.bf16.mxu0 0
        %941 = vmatpush1.bf16.xpose.msra.mxu0 0
        %942 = vmatprep.mubr.bf16.mxu0 0
        %943 = vmatmul.mubr.bf16.gmra.mrb[0].mxu0 %v905
        %v944 = vpop.f32.mrb[0].mxu0
        %v945 = vadd.f32 %v810, %v944
        %v946 = vpop.f32.mrb[0].mxu0
        %v947 = vpop.f32.mrb[0].mxu0
        %v948 = vpop.f32.mrb[0].mxu0
        %949 = vdwg.mxu0
        %v951 = vsel %vm811, %v660, 0
        %v954 = vsel %vm811, %v732, 0
        %956 = vmatprep.subr.bf16.mxu0 0
        %957 = vmatpush1.bf16.xpose.msra.mxu0 %v954
        %958 = vmatprep.subr.bf16.mxu0 0
        %959 = vmatpush1.bf16.xpose.msra.mxu0 0
        %960 = vmatprep.subr.bf16.mxu0 0
        %961 = vmatpush1.bf16.xpose.msra.mxu0 0
        %962 = vmatprep.subr.bf16.mxu0 0
        %963 = vmatpush1.bf16.xpose.msra.mxu0 0
        %964 = vmatprep.subr.bf16.mxu0 0
        %965 = vmatpush1.bf16.xpose.msra.mxu0 0
        %966 = vmatprep.subr.bf16.mxu0 0
        %967 = vmatpush1.bf16.xpose.msra.mxu0 0
        %968 = vmatprep.subr.bf16.mxu0 0
        %969 = vmatpush1.bf16.xpose.msra.mxu0 0
        %970 = vmatprep.subr.bf16.mxu0 0
        %971 = vmatpush1.bf16.xpose.msra.mxu0 0
        %972 = vmatprep.subr.bf16.mxu0 0
        %973 = vmatpush1.bf16.xpose.msra.mxu0 0
        %974 = vmatprep.subr.bf16.mxu0 0
        %975 = vmatpush1.bf16.xpose.msra.mxu0 0
        %976 = vmatprep.subr.bf16.mxu0 0
        %977 = vmatpush1.bf16.xpose.msra.mxu0 0
        %978 = vmatprep.subr.bf16.mxu0 0
        %979 = vmatpush1.bf16.xpose.msra.mxu0 0
        %980 = vmatprep.subr.bf16.mxu0 0
        %981 = vmatpush1.bf16.xpose.msra.mxu0 0
        %982 = vmatprep.subr.bf16.mxu0 0
        %983 = vmatpush1.bf16.xpose.msra.mxu0 0
        %984 = vmatprep.subr.bf16.mxu0 0
        %985 = vmatpush1.bf16.xpose.msra.mxu0 0
        %986 = vmatprep.subr.bf16.mxu0 0
        %987 = vmatpush1.bf16.xpose.msra.mxu0 0
        %988 = vmatprep.mubr.bf16.mxu0 0
        %989 = vmatmul.mubr.bf16.gmra.mrb[0].mxu0 %v951
        %v990 = vpop.f32.mrb[0].mxu0
        %v991 = vadd.f32 %v810, %v990
        %v992 = vpop.f32.mrb[0].mxu0
        %v993 = vpop.f32.mrb[0].mxu0
        %v994 = vpop.f32.mrb[0].mxu0
        %995 = vdwg.mxu0
        %v996 = vsel %vm811, %v853, -inf
        %997 = vmax.xlane.f32.xlu0 %v996
        %v998 = vpop.xlane.xlu0 %997
        %v999 = vsel %vm811, %v899, -inf
        %1000 = vmax.xlane.f32.xlu0 %v999
        %v1001 = vpop.xlane.xlu0 %1000
        %v1002 = vsel %vm811, %v945, -inf
        %1003 = vmax.xlane.f32.xlu0 %v1002
        %v1004 = vpop.xlane.xlu0 %1003
        %v1005 = vsel %vm811, %v991, -inf
        %1006 = vmax.xlane.f32.xlu0 %v1005
        %v1007 = vpop.xlane.xlu0 %1006
        %v1008 = vsub.f32 %v853, %v998
        %v1009 = vsub.f32 %v899, %v1001
        %v1010 = vsub.f32 %v945, %v1004
        %v1011 = vsub.f32 %v991, %v1007
        %v1012 = vmul.f32 %v1008, 1.442695
        %v1013 = vpow.pop %v1012
        %v1014 = vmul.f32 %v1009, 1.442695
        %v1015 = vpow.pop %v1014
        %v1016 = vmul.f32 %v1010, 1.442695
        %v1017 = vpow.pop %v1016
        %v1018 = vmul.f32 %v1011, 1.442695
        %v1019 = vpow.pop %v1018
        %v1020 = vsel %vm811, %v1013, 0.0
        %1021 = vadd.xlane.f32.xlu0 %v1020
        %v1022 = vpop.xlane.xlu0 %1021
        %v1023 = vsel %vm811, %v1015, 0.0
        %1024 = vadd.xlane.f32.xlu0 %v1023
        %v1025 = vpop.xlane.xlu0 %1024
        %v1026 = vsel %vm811, %v1017, 0.0
        %1027 = vadd.xlane.f32.xlu0 %v1026
        %v1028 = vpop.xlane.xlu0 %1027
        %v1029 = vsel %vm811, %v1019, 0.0
        %1030 = vadd.xlane.f32.xlu0 %v1029
        %v1031 = vpop.xlane.xlu0 %1030
        %v1032 = vrcp.pop %v1022
        %v1033 = vrcp.pop %v1025
        %v1034 = vrcp.pop %v1028
        %v1035 = vrcp.pop %v1031
        %v1036 = vmul.f32 %v1013, %v1032
        %v1037 = vmul.f32 %v1015, %v1033
        %v1038 = vmul.f32 %v1017, %v1034
        %v1039 = vmul.f32 %v1019, %v1035
        %v1040 = vpack.c.bf16 %v1036, %v1036
        %v1041 = vpack.c.bf16 %v1037, %v1037
        %v1042 = vpack.c.bf16 %v1038, %v1038
        %v1043 = vpack.c.bf16 %v1039, %v1039
        %v1045 = vsel %vm811, %v1040, 0
        %vm1047 = vcmask 1043456
        %v1049 = vsel %vm1047, %v801, 0
        %1051 = vmatprep.subr.bf16.mxu0 0
        %1052 = vmatpush1.bf16.msra.mxu0 %v1049
        %1053 = vmatprep.subr.bf16.mxu0 0
        %1054 = vmatpush1.bf16.msra.mxu0 0
        %1055 = vmatprep.subr.bf16.mxu0 0
        %1056 = vmatpush1.bf16.msra.mxu0 0
        %1057 = vmatprep.subr.bf16.mxu0 0
        %1058 = vmatpush1.bf16.msra.mxu0 0
        %1059 = vmatprep.subr.bf16.mxu0 0
        %1060 = vmatpush1.bf16.msra.mxu0 0
        %1061 = vmatprep.subr.bf16.mxu0 0
        %1062 = vmatpush1.bf16.msra.mxu0 0
        %1063 = vmatprep.subr.bf16.mxu0 0
        %1064 = vmatpush1.bf16.msra.mxu0 0
        %1065 = vmatprep.subr.bf16.mxu0 0
        %1066 = vmatpush1.bf16.msra.mxu0 0
        %1067 = vmatprep.subr.bf16.mxu0 0
        %1068 = vmatpush1.bf16.msra.mxu0 0
        %1069 = vmatprep.subr.bf16.mxu0 0
        %1070 = vmatpush1.bf16.msra.mxu0 0
        %1071 = vmatprep.subr.bf16.mxu0 0
        %1072 = vmatpush1.bf16.msra.mxu0 0
        %1073 = vmatprep.subr.bf16.mxu0 0
        %1074 = vmatpush1.bf16.msra.mxu0 0
        %1075 = vmatprep.subr.bf16.mxu0 0
        %1076 = vmatpush1.bf16.msra.mxu0 0
        %1077 = vmatprep.subr.bf16.mxu0 0
        %1078 = vmatpush1.bf16.msra.mxu0 0
        %1079 = vmatprep.subr.bf16.mxu0 0
        %1080 = vmatpush1.bf16.msra.mxu0 0
        %1081 = vmatprep.subr.bf16.mxu0 0
        %1082 = vmatpush1.bf16.msra.mxu0 0
        %1083 = vmatprep.mubr.bf16.mxu0 0
        %1084 = vmatmul.mubr.bf16.gmra.mrb[0].mxu0 %v1045
        %v1085 = vpop.f32.mrb[0].mxu0
        %v1086 = vadd.f32 0.0, %v1085
        %v1087 = vpop.f32.mrb[0].mxu0
        %v1088 = vpop.f32.mrb[0].mxu0
        %v1089 = vpop.f32.mrb[0].mxu0
        %1090 = vdwg.mxu0
        %v1092 = vsel %vm811, %v1041, 0
        %v1095 = vsel %vm1047, %v802, 0
        %1097 = vmatprep.subr.bf16.mxu0 0
        %1098 = vmatpush1.bf16.msra.mxu0 %v1095
        %1099 = vmatprep.subr.bf16.mxu0 0
        %1100 = vmatpush1.bf16.msra.mxu0 0
        %1101 = vmatprep.subr.bf16.mxu0 0
        %1102 = vmatpush1.bf16.msra.mxu0 0
        %1103 = vmatprep.subr.bf16.mxu0 0
        %1104 = vmatpush1.bf16.msra.mxu0 0
        %1105 = vmatprep.subr.bf16.mxu0 0
        %1106 = vmatpush1.bf16.msra.mxu0 0
        %1107 = vmatprep.subr.bf16.mxu0 0
        %1108 = vmatpush1.bf16.msra.mxu0 0
        %1109 = vmatprep.subr.bf16.mxu0 0
        %1110 = vmatpush1.bf16.msra.mxu0 0
        %1111 = vmatprep.subr.bf16.mxu0 0
        %1112 = vmatpush1.bf16.msra.mxu0 0
        %1113 = vmatprep.subr.bf16.mxu0 0
        %1114 = vmatpush1.bf16.msra.mxu0 0
        %1115 = vmatprep.subr.bf16.mxu0 0
        %1116 = vmatpush1.bf16.msra.mxu0 0
        %1117 = vmatprep.subr.bf16.mxu0 0
        %1118 = vmatpush1.bf16.msra.mxu0 0
        %1119 = vmatprep.subr.bf16.mxu0 0
        %1120 = vmatpush1.bf16.msra.mxu0 0
        %1121 = vmatprep.subr.bf16.mxu0 0
        %1122 = vmatpush1.bf16.msra.mxu0 0
        %1123 = vmatprep.subr.bf16.mxu0 0
        %1124 = vmatpush1.bf16.msra.mxu0 0
        %1125 = vmatprep.subr.bf16.mxu0 0
        %1126 = vmatpush1.bf16.msra.mxu0 0
        %1127 = vmatprep.subr.bf16.mxu0 0
        %1128 = vmatpush1.bf16.msra.mxu0 0
        %1129 = vmatprep.mubr.bf16.mxu0 0
        %1130 = vmatmul.mubr.bf16.gmra.mrb[0].mxu0 %v1092
        %v1131 = vpop.f32.mrb[0].mxu0
        %v1132 = vadd.f32 0.0, %v1131
        %v1133 = vpop.f32.mrb[0].mxu0
        %v1134 = vpop.f32.mrb[0].mxu0
        %v1135 = vpop.f32.mrb[0].mxu0
        %1136 = vdwg.mxu0
        %v1138 = vsel %vm811, %v1042, 0
        %v1141 = vsel %vm1047, %v803, 0
        %1143 = vmatprep.subr.bf16.mxu0 0
        %1144 = vmatpush1.bf16.msra.mxu0 %v1141
        %1145 = vmatprep.subr.bf16.mxu0 0
        %1146 = vmatpush1.bf16.msra.mxu0 0
        %1147 = vmatprep.subr.bf16.mxu0 0
        %1148 = vmatpush1.bf16.msra.mxu0 0
        %1149 = vmatprep.subr.bf16.mxu0 0
        %1150 = vmatpush1.bf16.msra.mxu0 0
        %1151 = vmatprep.subr.bf16.mxu0 0
        %1152 = vmatpush1.bf16.msra.mxu0 0
        %1153 = vmatprep.subr.bf16.mxu0 0
        %1154 = vmatpush1.bf16.msra.mxu0 0
        %1155 = vmatprep.subr.bf16.mxu0 0
        %1156 = vmatpush1.bf16.msra.mxu0 0
        %1157 = vmatprep.subr.bf16.mxu0 0
        %1158 = vmatpush1.bf16.msra.mxu0 0
        %1159 = vmatprep.subr.bf16.mxu0 0
        %1160 = vmatpush1.bf16.msra.mxu0 0
        %1161 = vmatprep.subr.bf16.mxu0 0
        %1162 = vmatpush1.bf16.msra.mxu0 0
        %1163 = vmatprep.subr.bf16.mxu0 0
        %1164 = vmatpush1.bf16.msra.mxu0 0
        %1165 = vmatprep.subr.bf16.mxu0 0
        %1166 = vmatpush1.bf16.msra.mxu0 0
        %1167 = vmatprep.subr.bf16.mxu0 0
        %1168 = vmatpush1.bf16.msra.mxu0 0
        %1169 = vmatprep.subr.bf16.mxu0 0
        %1170 = vmatpush1.bf16.msra.mxu0 0
        %1171 = vmatprep.subr.bf16.mxu0 0
        %1172 = vmatpush1.bf16.msra.mxu0 0
        %1173 = vmatprep.subr.bf16.mxu0 0
        %1174 = vmatpush1.bf16.msra.mxu0 0
        %1175 = vmatprep.mubr.bf16.mxu0 0
        %1176 = vmatmul.mubr.bf16.gmra.mrb[0].mxu0 %v1138
        %v1177 = vpop.f32.mrb[0].mxu0
        %v1178 = vadd.f32 0.0, %v1177
        %v1179 = vpop.f32.mrb[0].mxu0
        %v1180 = vpop.f32.mrb[0].mxu0
        %v1181 = vpop.f32.mrb[0].mxu0
        %1182 = vdwg.mxu0
        %v1184 = vsel %vm811, %v1043, 0
        %v1187 = vsel %vm1047, %v804, 0
        %1189 = vmatprep.subr.bf16.mxu0 0
        %1190 = vmatpush1.bf16.msra.mxu0 %v1187
        %1191 = vmatprep.subr.bf16.mxu0 0
        %1192 = vmatpush1.bf16.msra.mxu0 0
        %1193 = vmatprep.subr.bf16.mxu0 0
        %1194 = vmatpush1.bf16.msra.mxu0 0
        %1195 = vmatprep.subr.bf16.mxu0 0
        %1196 = vmatpush1.bf16.msra.mxu0 0
        %1197 = vmatprep.subr.bf16.mxu0 0
        %1198 = vmatpush1.bf16.msra.mxu0 0
        %1199 = vmatprep.subr.bf16.mxu0 0
        %1200 = vmatpush1.bf16.msra.mxu0 0
        %1201 = vmatprep.subr.bf16.mxu0 0
        %1202 = vmatpush1.bf16.msra.mxu0 0
        %1203 = vmatprep.subr.bf16.mxu0 0
        %1204 = vmatpush1.bf16.msra.mxu0 0
        %1205 = vmatprep.subr.bf16.mxu0 0
        %1206 = vmatpush1.bf16.msra.mxu0 0
        %1207 = vmatprep.subr.bf16.mxu0 0
        %1208 = vmatpush1.bf16.msra.mxu0 0
        %1209 = vmatprep.subr.bf16.mxu0 0
        %1210 = vmatpush1.bf16.msra.mxu0 0
        %1211 = vmatprep.subr.bf16.mxu0 0
        %1212 = vmatpush1.bf16.msra.mxu0 0
        %1213 = vmatprep.subr.bf16.mxu0 0
        %1214 = vmatpush1.bf16.msra.mxu0 0
        %1215 = vmatprep.subr.bf16.mxu0 0
        %1216 = vmatpush1.bf16.msra.mxu0 0
        %1217 = vmatprep.subr.bf16.mxu0 0
        %1218 = vmatpush1.bf16.msra.mxu0 0
        %1219 = vmatprep.subr.bf16.mxu0 0
        %1220 = vmatpush1.bf16.msra.mxu0 0
        %1221 = vmatprep.mubr.bf16.mxu0 0
        %1222 = vmatmul.mubr.bf16.gmra.mrb[0].mxu0 %v1184
        %v1223 = vpop.f32.mrb[0].mxu0
        %v1224 = vadd.f32 0.0, %v1223
        %v1225 = vpop.f32.mrb[0].mxu0
        %v1226 = vpop.f32.mrb[0].mxu0
        %v1227 = vpop.f32.mrb[0].mxu0
        %1228 = vdwg.mxu0
        %v1229 = vcombine.low %v1086, %v1178
        %v1230 = vcombine.high %v1086, %v1178
        %v1232 = vunpack.c.l.s4 1983009808
        %v1233 = vunpack.c.0.s8 %v1232
        %v1234 = vlaneseq
        %v1235 = vshrl.u32 %v1234, 7
        %v1236 = vsub.s32 %v1233, %v1235
        %v1237 = vrot.slane %v1229, %v1236
        %v1239 = vunpack.c.l.s4 1983009808
        %v1240 = vunpack.c.0.s8 %v1239
        %v1241 = vlaneseq
        %v1242 = vshrl.u32 %v1241, 7
        %v1243 = vsub.s32 %v1240, %v1242
        %v1244 = vrot.slane %v1230, %v1243
        %v1245 = vcombine.low %v1132, %v1224
        %v1246 = vcombine.high %v1132, %v1224
        %v1248 = vunpack.c.l.s4 1983009808
        %v1249 = vunpack.c.0.s8 %v1248
        %v1250 = vlaneseq
        %v1251 = vshrl.u32 %v1250, 7
        %v1252 = vsub.s32 %v1249, %v1251
        %v1253 = vrot.slane %v1245, %v1252
        %v1255 = vunpack.c.l.s4 1983009808
        %v1256 = vunpack.c.0.s8 %v1255
        %v1257 = vlaneseq
        %v1258 = vshrl.u32 %v1257, 7
        %v1259 = vsub.s32 %v1256, %v1258
        %v1260 = vrot.slane %v1246, %v1259
        %v1261 = vcombine.low %v1237, %v1253
        %v1262 = vcombine.high %v1237, %v1253
        %v1264 = vunpack.c.l.s4 1934713408
        %v1265 = vunpack.c.0.s8 %v1264
        %v1266 = vlaneseq
        %v1267 = vshrl.u32 %v1266, 7
        %v1268 = vsub.s32 %v1265, %v1267
        %v1269 = vrot.slane %v1261, %v1268
        %v1271 = vunpack.c.l.s4 1934713408
        %v1272 = vunpack.c.0.s8 %v1271
        %v1273 = vlaneseq
        %v1274 = vshrl.u32 %v1273, 7
        %v1275 = vsub.s32 %v1272, %v1274
        %v1276 = vrot.slane %v1262, %v1275
        %v1277 = vcombine.low %v1244, %v1260
        %v1278 = vcombine.high %v1244, %v1260
        %v1280 = vunpack.c.l.s4 1934713408
        %v1281 = vunpack.c.0.s8 %v1280
        %v1282 = vlaneseq
        %v1283 = vshrl.u32 %v1282, 7
        %v1284 = vsub.s32 %v1281, %v1283
        %v1285 = vrot.slane %v1277, %v1284
        %v1287 = vunpack.c.l.s4 1934713408
        %v1288 = vunpack.c.0.s8 %v1287
        %v1289 = vlaneseq
        %v1290 = vshrl.u32 %v1289, 7
        %v1291 = vsub.s32 %v1288, %v1290
        %v1292 = vrot.slane %v1278, %v1291
        %v1293 = vcombine.high %v1269, 0.0
        %v1294 = vcombine.high %v1276, 0.0
        %v1295 = vcombine.high %v1285, 0.0
        %v1296 = vcombine.high %v1292, 0.0
        %v1297 = vcombine.low %v1269, %v1276
        %v1299 = vunpack.c.l.s4 1983009808
        %v1300 = vunpack.c.0.s8 %v1299
        %v1301 = vlaneseq
        %v1302 = vshrl.u32 %v1301, 7
        %v1303 = vsub.s32 %v1300, %v1302
        %v1304 = vrot.slane %v1297, %v1303
        %v1305 = vcombine.low %v1293, %v1294
        %v1307 = vunpack.c.l.s4 1983009808
        %v1308 = vunpack.c.0.s8 %v1307
        %v1309 = vlaneseq
        %v1310 = vshrl.u32 %v1309, 7
        %v1311 = vsub.s32 %v1308, %v1310
        %v1312 = vrot.slane %v1305, %v1311
        %v1313 = vcombine.low %v1285, %v1292
        %v1315 = vunpack.c.l.s4 1983009808
        %v1316 = vunpack.c.0.s8 %v1315
        %v1317 = vlaneseq
        %v1318 = vshrl.u32 %v1317, 7
        %v1319 = vsub.s32 %v1316, %v1318
        %v1320 = vrot.slane %v1313, %v1319
        %v1321 = vcombine.low %v1295, %v1296
        %v1323 = vunpack.c.l.s4 1983009808
        %v1324 = vunpack.c.0.s8 %v1323
        %v1325 = vlaneseq
        %v1326 = vshrl.u32 %v1325, 7
        %v1327 = vsub.s32 %v1324, %v1326
        %v1328 = vrot.slane %v1321, %v1327
        %v1329 = vcombine.low %v1304, %v1312
        %v1330 = vcombine.high %v1304, %v1312
        %v1332 = vunpack.c.l.s4 1934713408
        %v1333 = vunpack.c.0.s8 %v1332
        %v1334 = vlaneseq
        %v1335 = vshrl.u32 %v1334, 7
        %v1336 = vsub.s32 %v1333, %v1335
        %v1337 = vrot.slane %v1329, %v1336
        %v1339 = vunpack.c.l.s4 1934713408
        %v1340 = vunpack.c.0.s8 %v1339
        %v1341 = vlaneseq
        %v1342 = vshrl.u32 %v1341, 7
        %v1343 = vsub.s32 %v1340, %v1342
        %v1344 = vrot.slane %v1330, %v1343
        %v1345 = vcombine.low %v1320, %v1328
        %v1346 = vcombine.high %v1320, %v1328
        %v1348 = vunpack.c.l.s4 1934713408
        %v1349 = vunpack.c.0.s8 %v1348
        %v1350 = vlaneseq
        %v1351 = vshrl.u32 %v1350, 7
        %v1352 = vsub.s32 %v1349, %v1351
        %v1353 = vrot.slane %v1345, %v1352
        %v1355 = vunpack.c.l.s4 1934713408
        %v1356 = vunpack.c.0.s8 %v1355
        %v1357 = vlaneseq
        %v1358 = vshrl.u32 %v1357, 7
        %v1359 = vsub.s32 %v1356, %v1358
        %v1360 = vrot.slane %v1346, %v1359
        %v1361 = vcombine.low %v1337, %v1353
        %v1362 = vcombine.high %v1337, %v1353
        %v1363 = vcombine.low %v1344, %v1360
        %v1364 = vcombine.high %v1344, %v1360
        %1366 = vrot.lane.b32.xlu0 %v1362, 8
        %v1367 = vpop.permute.xlu0 %1366
        %1370 = vrot.lane.b32.xlu0 %v1363, 16
        %v1371 = vpop.permute.xlu0 %1370
        %1374 = vrot.lane.b32.xlu0 %v1364, 24
        %v1375 = vpop.permute.xlu0 %1374
        %v1377 = vsel %vm811, %v1361, %v1367
        %vm1378 = vcmask 130048
        %v1379 = vsel %vm1378, %v1377, %v1371
        %vm1380 = vcmask 195584
        %v1381 = vsel %vm1380, %v1379, %v1375
        %v1382 = vpack.c.bf16 %v1381, %v1381
        %v1383 = vld [vmem:[%s3] sm:$0xf]
        %v1384 = vld [vmem:[%s3 + $0x4] sm:$0xf]
        %v1385 = vld [vmem:[%s3 + $0x8] sm:$0xf]
        %v1386 = vld [vmem:[%s3 + $0xc] sm:$0xf]
        %v1391 = vunpack.c.l.b16 %v1383
        %v1392 = vunpack.c.l.b16 %v1384
        %v1393 = vunpack.c.l.b16 %v1385
        %v1394 = vunpack.c.l.b16 %v1386
        %v1395 = vpack.c.b16 %v1392, %v1391
        %v1396 = vpack.c.b16 %v1394, %v1393
        %v1400 = vsel %vm299, %v1382, 0
        %1402 = vmatprep.subr.bf16.mxu0 0
        %1403 = vmatpush1.bf16.msra.mxu0 %v1395
        %1404 = vmatprep.subr.bf16.mxu0 0
        %1405 = vmatpush1.bf16.msra.mxu0 %v1396
        %1406 = vmatprep.subr.bf16.mxu0 0
        %1407 = vmatpush1.bf16.msra.mxu0 0
        %1408 = vmatprep.subr.bf16.mxu0 0
        %1409 = vmatpush1.bf16.msra.mxu0 0
        %1410 = vmatprep.subr.bf16.mxu0 0
        %1411 = vmatpush1.bf16.msra.mxu0 0
        %1412 = vmatprep.subr.bf16.mxu0 0
        %1413 = vmatpush1.bf16.msra.mxu0 0
        %1414 = vmatprep.subr.bf16.mxu0 0
        %1415 = vmatpush1.bf16.msra.mxu0 0
        %1416 = vmatprep.subr.bf16.mxu0 0
        %1417 = vmatpush1.bf16.msra.mxu0 0
        %1418 = vmatprep.subr.bf16.mxu0 0
        %1419 = vmatpush1.bf16.msra.mxu0 0
        %1420 = vmatprep.subr.bf16.mxu0 0
        %1421 = vmatpush1.bf16.msra.mxu0 0
        %1422 = vmatprep.subr.bf16.mxu0 0
        %1423 = vmatpush1.bf16.msra.mxu0 0
        %1424 = vmatprep.subr.bf16.mxu0 0
        %1425 = vmatpush1.bf16.msra.mxu0 0
        %1426 = vmatprep.subr.bf16.mxu0 0
        %1427 = vmatpush1.bf16.msra.mxu0 0
        %1428 = vmatprep.subr.bf16.mxu0 0
        %1429 = vmatpush1.bf16.msra.mxu0 0
        %1430 = vmatprep.subr.bf16.mxu0 0
        %1431 = vmatpush1.bf16.msra.mxu0 0
        %1432 = vmatprep.subr.bf16.mxu0 0
        %1433 = vmatpush1.bf16.msra.mxu0 0
        %1434 = vmatprep.mubr.bf16.mxu0 0
        %1435 = vmatmul.mubr.bf16.gmra.mrb[0].mxu0 %v1400
        %v1436 = vpop.f32.mrb[0].mxu0
        %v1437 = vadd.f32 0.0, %v1436
        %v1438 = vpop.f32.mrb[0].mxu0
        %v1439 = vpop.f32.mrb[0].mxu0
        %v1440 = vpop.f32.mrb[0].mxu0
        %1441 = vdwg.mxu0
        %v1442 = vld [vmem:[#allocation7] sm:$0x3f]
        %v1443 = vadd.f32 %v281, %v1437
        %v1444 = vsel %vm299, %v1443, 0.0
        %1445 = vadd.xlane.f32.xlu0 %v1444
        %v1446 = vpop.xlane.xlu0 %1445
        %v1447 = vrcp.pop 32.0
        %v1448 = vmul.f32 %v1446, %v1447
        %v1449 = vsub.f32 %v1443, %v1448
        %v1450 = vmul.f32 %v1449, %v1449
        %v1451 = vsel %vm299, %v1450, 0.0
        %1452 = vadd.xlane.f32.xlu0 %v1451
        %v1453 = vpop.xlane.xlu0 %1452
        %v1454 = vmul.f32 %v1453, %v1447
        %v1455 = vadd.f32 %v1454, 1e-05
        %v1456 = vrsqrt.pop %v1455
        %v1457 = vmul.f32 %v1449, %v1456
        %v1458 = vlaneseq
        %v1459 = vshrl.u32 %v1458, 7
        %v1460 = vsub.s32 2, %v1459
        %v1461 = vrot.slane %v1442, %v1460
        %v1462 = vmul.f32 %v1457, %v1461
        %v1463 = vlaneseq
        %v1464 = vshrl.u32 %v1463, 7
        %v1465 = vsub.s32 3, %v1464
        %v1466 = vrot.slane %v1442, %v1465
        %v1467 = vadd.f32 %v1462, %v1466
        %v1468 = vpack.c.bf16 %v1467, %v1467
        %v1469 = vld [vmem:[#allocation4] sm:$0xf]
        %v1470 = vld [vmem:[#allocation4 + $0x4] sm:$0xf]
        %v1471 = vld [vmem:[#allocation4 + $0x8] sm:$0xf]
        %v1472 = vld [vmem:[#allocation4 + $0xc] sm:$0xf]
        %v1473 = vlaneseq
        %v1474 = vshrl.u32 %v1473, 7
        %v1475 = vsub.s32 0, %v1474
        %v1476 = vrot.slane %v1442, %v1475
        %v1481 = vunpack.c.l.b16 %v1469
        %v1482 = vunpack.c.l.b16 %v1470
        %v1483 = vunpack.c.l.b16 %v1471
        %v1484 = vunpack.c.l.b16 %v1472
        %v1485 = vpack.c.b16 %v1482, %v1481
        %v1486 = vpack.c.b16 %v1484, %v1483
        %v1490 = vsel %vm299, %v1468, 0
        %1492 = vmatprep.subr.bf16.mxu0 0
        %1493 = vmatpush1.bf16.msra.mxu0 %v1485
        %1494 = vmatprep.subr.bf16.mxu0 0
        %1495 = vmatpush1.bf16.msra.mxu0 %v1486
        %1496 = vmatprep.subr.bf16.mxu0 0
        %1497 = vmatpush1.bf16.msra.mxu0 0
        %1498 = vmatprep.subr.bf16.mxu0 0
        %1499 = vmatpush1.bf16.msra.mxu0 0
        %1500 = vmatprep.subr.bf16.mxu0 0
        %1501 = vmatpush1.bf16.msra.mxu0 0
        %1502 = vmatprep.subr.bf16.mxu0 0
        %1503 = vmatpush1.bf16.msra.mxu0 0
        %1504 = vmatprep.subr.bf16.mxu0 0
        %1505 = vmatpush1.bf16.msra.mxu0 0
        %1506 = vmatprep.subr.bf16.mxu0 0
        %1507 = vmatpush1.bf16.msra.mxu0 0
        %1508 = vmatprep.subr.bf16.mxu0 0
        %1509 = vmatpush1.bf16.msra.mxu0 0
        %1510 = vmatprep.subr.bf16.mxu0 0
        %1511 = vmatpush1.bf16.msra.mxu0 0
        %1512 = vmatprep.subr.bf16.mxu0 0
        %1513 = vmatpush1.bf16.msra.mxu0 0
        %1514 = vmatprep.subr.bf16.mxu0 0
        %1515 = vmatpush1.bf16.msra.mxu0 0
        %1516 = vmatprep.subr.bf16.mxu0 0
        %1517 = vmatpush1.bf16.msra.mxu0 0
        %1518 = vmatprep.subr.bf16.mxu0 0
        %1519 = vmatpush1.bf16.msra.mxu0 0
        %1520 = vmatprep.subr.bf16.mxu0 0
        %1521 = vmatpush1.bf16.msra.mxu0 0
        %1522 = vmatprep.subr.bf16.mxu0 0
        %1523 = vmatpush1.bf16.msra.mxu0 0
        %1524 = vmatprep.mubr.bf16.mxu0 0
        %1525 = vmatmul.mubr.bf16.gmra.mrb[0].mxu0 %v1490
        %v1526 = vpop.f32.mrb[0].mxu0
        %v1527 = vadd.f32 %v1476, %v1526
        %v1528 = vpop.f32.mrb[0].mxu0
        %v1529 = vpop.f32.mrb[0].mxu0
        %v1530 = vpop.f32.mrb[0].mxu0
        %1531 = vdwg.mxu0
        %v1532 = vmax.f32 %v1527, 0.0
        %v1533 = vpack.c.bf16 %v1532, %v1532
        %v1534 = vld [vmem:[%s5] sm:$0xf]
        %v1535 = vld [vmem:[%s5 + $0x4] sm:$0xf]
        %v1536 = vld [vmem:[%s5 + $0x8] sm:$0xf]
        %v1537 = vld [vmem:[%s5 + $0xc] sm:$0xf]
        %v1538 = vld [vmem:[%s5 + $0x10] sm:$0xf]
        %v1539 = vld [vmem:[%s5 + $0x14] sm:$0xf]
        %v1540 = vld [vmem:[%s5 + $0x18] sm:$0xf]
        %v1541 = vld [vmem:[%s5 + $0x1c] sm:$0xf]
        %v1542 = vlaneseq
        %v1543 = vshrl.u32 %v1542, 7
        %v1544 = vsub.s32 1, %v1543
        %v1545 = vrot.slane %v1442, %v1544
        %v1554 = vunpack.c.l.b16 %v1534
        %v1555 = vunpack.c.l.b16 %v1535
        %v1556 = vunpack.c.l.b16 %v1536
        %v1557 = vunpack.c.l.b16 %v1537
        %v1558 = vunpack.c.l.b16 %v1538
        %v1559 = vunpack.c.l.b16 %v1539
        %v1560 = vunpack.c.l.b16 %v1540
        %v1561 = vunpack.c.l.b16 %v1541
        %v1562 = vpack.c.b16 %v1555, %v1554
        %v1563 = vpack.c.b16 %v1557, %v1556
        %v1564 = vpack.c.b16 %v1559, %v1558
        %v1565 = vpack.c.b16 %v1561, %v1560
        %vm1570 = vcmask 523264
        %v1572 = vsel %vm1570, %v1533, 0
        %1574 = vmatprep.subr.bf16.mxu0 0
        %1575 = vmatpush1.bf16.msra.mxu0 %v1562
        %1576 = vmatprep.subr.bf16.mxu0 0
        %1577 = vmatpush1.bf16.msra.mxu0 %v1563
        %1578 = vmatprep.subr.bf16.mxu0 0
        %1579 = vmatpush1.bf16.msra.mxu0 %v1564
        %1580 = vmatprep.subr.bf16.mxu0 0
        %1581 = vmatpush1.bf16.msra.mxu0 %v1565
        %1582 = vmatprep.subr.bf16.mxu0 0
        %1583 = vmatpush1.bf16.msra.mxu0 0
        %1584 = vmatprep.subr.bf16.mxu0 0
        %1585 = vmatpush1.bf16.msra.mxu0 0
        %1586 = vmatprep.subr.bf16.mxu0 0
        %1587 = vmatpush1.bf16.msra.mxu0 0
        %1588 = vmatprep.subr.bf16.mxu0 0
        %1589 = vmatpush1.bf16.msra.mxu0 0
        %1590 = vmatprep.subr.bf16.mxu0 0
        %1591 = vmatpush1.bf16.msra.mxu0 0
        %1592 = vmatprep.subr.bf16.mxu0 0
        %1593 = vmatpush1.bf16.msra.mxu0 0
        %1594 = vmatprep.subr.bf16.mxu0 0
        %1595 = vmatpush1.bf16.msra.mxu0 0
        %1596 = vmatprep.subr.bf16.mxu0 0
        %1597 = vmatpush1.bf16.msra.mxu0 0
        %1598 = vmatprep.subr.bf16.mxu0 0
        %1599 = vmatpush1.bf16.msra.mxu0 0
        %1600 = vmatprep.subr.bf16.mxu0 0
        %1601 = vmatpush1.bf16.msra.mxu0 0
        %1602 = vmatprep.subr.bf16.mxu0 0
        %1603 = vmatpush1.bf16.msra.mxu0 0
        %1604 = vmatprep.subr.bf16.mxu0 0
        %1605 = vmatpush1.bf16.msra.mxu0 0
        %1606 = vmatprep.mubr.bf16.mxu0 0
        %1607 = vmatmul.mubr.bf16.gmra.mrb[0].mxu0 %v1572
        %v1608 = vpop.f32.mrb[0].mxu0
        %v1609 = vadd.f32 %v1545, %v1608
        %v1610 = vpop.f32.mrb[0].mxu0
        %v1611 = vpop.f32.mrb[0].mxu0
        %v1612 = vpop.f32.mrb[0].mxu0
        %1613 = vdwg.mxu0
        %v1614 = vadd.f32 %v1467, %v1609
        %v1615 = vsel %vm299, %v1614, 0.0
        %1616 = vadd.xlane.f32.xlu0 %v1615
        %v1617 = vpop.xlane.xlu0 %1616
        %v1618 = vmul.f32 %v1617, %v1447
        %v1619 = vsub.f32 %v1614, %v1618
        %v1620 = vmul.f32 %v1619, %v1619
        %v1621 = vsel %vm299, %v1620, 0.0
        %1622 = vadd.xlane.f32.xlu0 %v1621
        %v1623 = vpop.xlane.xlu0 %1622
        %v1624 = vmul.f32 %v1623, %v1447
        %v1625 = vadd.f32 %v1624, 1e-05
        %v1626 = vrsqrt.pop %v1625
        %v1627 = vmul.f32 %v1619, %v1626
        %v1628 = vlaneseq
        %v1629 = vshrl.u32 %v1628, 7
        %v1630 = vsub.s32 4, %v1629
        %v1631 = vrot.slane %v1442, %v1630
        %v1632 = vmul.f32 %v1627, %v1631
        %v1633 = vlaneseq
        %v1634 = vshrl.u32 %v1633, 7
        %v1635 = vsub.s32 5, %v1634
        %v1636 = vrot.slane %v1442, %v1635
        %v1637 = vadd.f32 %v1632, %v1636
        %1638 = vst.msk [vmem:[%s275] sm:$0xff] %vm299, %v1637
        %s1639 = sand.u32 %s166, 1
        %s1640 = scalar_lea.sflag [#allocation6], %s1639
        %s1641 = sand.u32 %s166, 1
        %s1642 = smul.addr %s1641, 8
        %s1643 = scalar_lea.vmem [#allocation9], %s1642
        // Predicated region
        $region53: #{tpu_custom_call.1} parent=43 // pred_check
          %p1644 = pneg %p176
        $region54: #{tpu_custom_call.1} parent=43 // pred_check_branch
          %1646 = sbr.rel (%p1644) target = $region56
        $region55: #{tpu_custom_call.1} parent=43 // pred_region
          %s1648 = ssub.s32 128, 128
          %1649 = vsyncadd %s1640, %s1648
          %s1650 = smul.addr %s27, 128
          %s1651 = scalar_lea.hbm %s7, %s1650
          %s1653 = sshll.u32 %s1643, 4
          %s1654 = int_to_ptr.vmem [resolvable:$true] %s1653
          %1656 = dma.vmem_to_hbm [thread:$0]  %s1654, 128, %s1651, %s1640
        $region56: #{tpu_custom_call.1} parent=43 // pred_fallthru
          _
      $region44: #{tpu_custom_call.1} parent=5 // pred_fallthru
        _
      %p1657 = scmp.le.s32.totalorder 2, %s22
      // Predicated region
      $region57: #{tpu_custom_call.1} parent=5 // pred_check
        %p1658 = pneg %p1657
      $region58: #{tpu_custom_call.1} parent=5 // pred_check_branch
        %1660 = sbr.rel (%p1658) target = $region60
      $region59: #{tpu_custom_call.1} parent=5 // pred_region
        %s1661 = ssub.s32 %s22, 2
        // Predicated region
        $region61: #{tpu_custom_call.1} parent=59 // pred_check
          %p1662 = pneg %p182
        $region62: #{tpu_custom_call.1} parent=59 // pred_check_branch
          %1664 = sbr.rel (%p1662) target = $region64
        $region63: #{tpu_custom_call.1} parent=59 // pred_region
          %s1665 = sand.u32 %s167, 1
          %s1666 = scalar_lea.sflag [#allocation6], %s1665
          %s1667 = sand.u32 %s167, 1
          %s1668 = smul.addr %s1667, 8
          %s1669 = scalar_lea.vmem [#allocation9], %s1668
          %1670 = dma.done %s1666, 128
        $region64: #{tpu_custom_call.1} parent=59 // pred_fallthru
          _
      $region60: #{tpu_custom_call.1} parent=5 // pred_fallthru
        _
    $region6: #{tpu_custom_call.1} parent=1 // loop_footer
      %s26 = sadd.s32 1, %s22
    $region7: #{tpu_custom_call.1} parent=1 // loop_footer_branch
      %21 = sbr.rel target = $region3
    $region8: #{tpu_custom_call.1} parent=1 // loop_exit
      _
    %1671 = vsyncpa [#allocation5], 1
    %s1672 = scalar_lea.sflag [#allocation5], 1
    %1673 = vsyncpa %s1672, 1
    %1674 = vsyncpa [#allocation8], 1
    %1675 = vsyncpa [#allocation6], 1
    %s1676 = scalar_lea.sflag [#allocation6], 1
    %1677 = vsyncpa %s1676, 1

</llo_original>
